<compile_context>
chip_gen: v5e
topology: v5e:2x2
jax: 0.10.0
libtpu: 0.0.40
codegen_flags: <defaults>
</compile_context>

<pallas_src>
import numpy as np
import jax
import jax.numpy as jnp
from jax import lax
from jax.experimental import pallas as pl
from jax.experimental.pallas import tpu as pltpu

POOL_SIZES = (2, 4, 8)
BN_EPS = 1e-5


# ---------------------------------------------------------------------------
# Operator-matrix builders (plain numpy, float64 for the folds)
# ---------------------------------------------------------------------------
def _round_up(x, m):
    return ((x + m - 1) // m) * m


def _avgpool_matrix(in_size, sz):
    out = in_size // sz
    m = np.zeros((out, in_size), np.float64)
    for p in range(out):
        m[p, p * sz:(p + 1) * sz] = 1.0 / sz
    return m


def _bilinear_matrix(out_size, in_size):
    # Matches torch F.interpolate(mode='bilinear', align_corners=False) for upsampling.
    scale = in_size / out_size
    dst = np.arange(out_size, dtype=np.float64)
    src = np.maximum(scale * (dst + 0.5) - 0.5, 0.0)
    i0 = np.minimum(np.floor(src).astype(np.int64), in_size - 1)
    i1 = np.minimum(i0 + 1, in_size - 1)
    frac = src - i0
    m = np.zeros((out_size, in_size), np.float64)
    rows = dst.astype(np.int64)
    m[rows, i0] += 1.0 - frac
    m[rows, i1] += frac
    return m


def _shift_matrix(n, d):
    """S[y, y'] = 1 iff y' == y + d, i.e. (S @ A)[y] = A[y + d] with zero pad."""
    m = np.zeros((n, n), np.float64)
    idx = np.arange(n)
    ok = (idx + d >= 0) & (idx + d < n)
    m[idx[ok], idx[ok] + d] = 1.0
    return m


def _conv_col_operator(weight, width, ky):
    """Column-space (lane) operator of a 3x3 conv (padding=1) row ky on the
    fused width*C layout: sum_kx kron(S_{kx-1}^T, W[:,:,ky,kx]^T).
    weight: (C_out, C_in, 3, 3).  Returns (width*C_in, width*C_out)."""
    op = np.zeros((width * weight.shape[1], width * weight.shape[0]), np.float64)
    for kx in range(3):
        op += np.kron(_shift_matrix(width, kx - 1).T, weight[:, :, ky, kx].T)
    return op


# ---------------------------------------------------------------------------
# Pallas kernel
# ---------------------------------------------------------------------------
def _make_kernel(num_branches):
    def kernel(*refs):
        it = iter(refs)
        x_ref = next(it)
        branches = [tuple(next(it) for _ in range(4)) for _ in range(num_branches)]
        bn_scale_ref = next(it)
        bn_shift_ref = next(it)
        asum_ref = next(it)
        csum_ref = next(it)
        out_ref = next(it)

        x = x_ref[...]                                   # bf16 (NB*H, W*C)
        resl = x.astype(jnp.float32)

        # Pyramid branches: 2 pooling matmuls + 3 folded conv column matmuls
        # + ONE merged row/upsample matmul (ky pieces stacked along sublanes).
        for ph_ref, pwk_ref, acat_ref, c_ref in branches:
            pooled = jnp.dot(ph_ref[...], x, preferred_element_type=jnp.float32)
            pooled = jnp.dot(pooled.astype(jnp.bfloat16), pwk_ref[...],
                             preferred_element_type=jnp.float32)
            pooled = pooled.astype(jnp.bfloat16)         # (P_pad, wp*C), P_pad % 8 == 0
            ts = [jnp.dot(pooled, c_ref[ky], preferred_element_type=jnp.float32)
                  for ky in range(3)]
            t_all = jnp.concatenate(ts, axis=0).astype(jnp.bfloat16)   # (3*P_pad, W*C)
            resl = resl + jnp.dot(acat_ref[...], t_all,
                                  preferred_element_type=jnp.float32)

        # Inference BatchNorm (folded per-channel scale/shift) + ReLU, one VPU op.
        resl = jnp.maximum(resl * bn_scale_ref[...] + bn_shift_ref[...], 0.0)
        resl = resl.astype(jnp.bfloat16)                 # (NB*H, W*C)

        # conv_sum (with the optional x2 bilinear upsample folded in):
        # 3 column matmuls + ONE merged row matmul (pieces are 8-row aligned,
        # output lanes W2*C_out are lane-dense).
        ts = [jnp.dot(resl, csum_ref[ky], preferred_element_type=jnp.float32)
              for ky in range(3)]
        t_all = jnp.concatenate(ts, axis=0).astype(jnp.bfloat16)       # (3*NB*H, W2*C_out)
        out_ref[...] = jnp.dot(asum_ref[...], t_all,
                               preferred_element_type=jnp.float32).astype(out_ref.dtype)

    return kernel


# ---------------------------------------------------------------------------
# Wrapper
# ---------------------------------------------------------------------------
def _pick_batch_block(n, out_rows_per_sample):
    """Largest divisor NB of n with NB*out_rows <= 512: amortizes per-grid-step
    overhead and raises the MXU M dim while keeping kron(I_NB, .) row operators small."""
    cap = max(1, 512 // max(out_rows_per_sample, 1))
    for cand in range(min(n, cap), 0, -1):
        if n % cand == 0:
            return cand
    return 1


def deep_pool_layer_forward(x_nchw, params, need_x2=True):
    n, c, h, w = x_nchw.shape
    assert h % 8 == 0 and w % 8 == 0, "pool sizes (2,4,8) require H, W divisible by 8"
    conv_ws = [np.asarray(wt, np.float64) for wt in params["conv_ws"]]
    conv_sum_w = np.asarray(params["conv_sum_w"], np.float64)
    c_out = conv_sum_w.shape[0]
    h2, w2 = (2 * h, 2 * w) if need_x2 else (h, w)

    nb = _pick_batch_block(n, h2)
    eye_c = np.eye(c, dtype=np.float64)
    eye_nb = np.eye(nb, dtype=np.float64)

    inputs, in_specs = [], []

    def add_const(arr, dtype):
        arr = jnp.asarray(np.asarray(arr, np.float32), dtype)
        inputs.append(arr)
        in_specs.append(pl.BlockSpec(arr.shape, lambda i, _nd=arr.ndim: (0,) * _nd))

    # Input in fused (N/NB, NB*H, W*C) layout; bf16 MXU operand.
    x3d = (jnp.transpose(x_nchw.astype(jnp.float32), (0, 2, 3, 1))
           .reshape(n // nb, nb * h, w * c).astype(jnp.bfloat16))
    inputs.append(x3d)
    in_specs.append(pl.BlockSpec((None, nb * h, w * c), lambda i: (i, 0, 0)))

    # Pyramid branch operators (pool / conv shifts / bilinear upsample folded).
    # Pooled row count is padded to a multiple of 8 so the in-kernel sublane
    # concatenate of the ky pieces is tile-aligned (padded rows/cols are zero).
    for sz, wt in zip(POOL_SIZES, conv_ws):
        hp, wp = h // sz, w // sz
        p_rows = nb * hp
        p_pad = _round_up(p_rows, 8)

        ph_kron = np.kron(eye_nb, _avgpool_matrix(h, sz))             # (nb*hp, nb*h)
        ph_padded = np.zeros((p_pad, nb * h), np.float64)
        ph_padded[:p_rows] = ph_kron

        pwk = np.kron(_avgpool_matrix(w, sz).T, eye_c)                # (w*c, wp*c)
        uh = _bilinear_matrix(h, hp)                                  # (h, hp)
        uwk = np.kron(_bilinear_matrix(w, wp).T, eye_c)               # (wp*c, w*c)

        a_blocks = []
        for ky in range(3):
            a = np.kron(eye_nb, uh @ _shift_matrix(hp, ky - 1))       # (nb*h, nb*hp)
            a_pad = np.zeros((nb * h, p_pad), np.float64)
            a_pad[:, :p_rows] = a
            a_blocks.append(a_pad)
        a_cat = np.concatenate(a_blocks, axis=1)                      # (nb*h, 3*p_pad)

        c_stack = np.stack([_conv_col_operator(wt, wp, ky) @ uwk
                            for ky in range(3)])                      # (3, wp*c, w*c)

        add_const(ph_padded, jnp.bfloat16)                            # (p_pad, nb*h)
        add_const(pwk, jnp.bfloat16)
        add_const(a_cat, jnp.bfloat16)
        add_const(c_stack, jnp.bfloat16)

    # Folded inference BN, tiled to the fused W*C lane layout (kept f32 for the VPU).
    gamma = np.asarray(params["bn_gamma"], np.float64)
    beta = np.asarray(params["bn_beta"], np.float64)
    mean = np.asarray(params["bn_mean"], np.float64)
    var = np.asarray(params["bn_var"], np.float64)
    scale = gamma / np.sqrt(var + BN_EPS)
    shift = beta - mean * scale
    add_const(np.tile(scale, w)[None, :], jnp.float32)                # (1, w*c)
    add_const(np.tile(shift, w)[None, :], jnp.float32)                # (1, w*c)

    # conv_sum (+ optional x2 upsample): 3 column operators and ONE merged row operator.
    if need_x2:
        u2h = _bilinear_matrix(h2, h)                                 # (h2, h)
        u2wk = np.kron(_bilinear_matrix(w2, w).T, eye_c)              # (w*c, w2*c)
        asum = [_shift_matrix(h2, ky - 1) @ u2h for ky in range(3)]   # (h2, h)
        csum = [u2wk @ _conv_col_operator(conv_sum_w, w2, ky)
                for ky in range(3)]                                   # (w*c, w2*c_out)
    else:
        asum = [_shift_matrix(h, ky - 1) for ky in range(3)]
        csum = [_conv_col_operator(conv_sum_w, w, ky) for ky in range(3)]
    asum_cat = np.concatenate([np.kron(eye_nb, a) for a in asum], axis=1)  # (nb*h2, 3*nb*h)
    add_const(asum_cat, jnp.bfloat16)
    add_const(np.stack(csum), jnp.bfloat16)                                # (3, w*c, w2*c_out)

    kernel = _make_kernel(len(POOL_SIZES))
    out3d = pl.pallas_call(
        kernel,
        out_shape=jax.ShapeDtypeStruct((n // nb, nb * h2, w2 * c_out), jnp.float32),
        grid=(n // nb,),
        in_specs=in_specs,
        out_specs=pl.BlockSpec((None, nb * h2, w2 * c_out), lambda i: (i, 0, 0)),
        compiler_params=pltpu.CompilerParams(dimension_semantics=("parallel",)),
    )(*inputs)

    return out3d.reshape(n, h2, w2, c_out).transpose(0, 3, 1, 2)      # NCHW


# ---------------------------------------------------------------------------
# Pure-JAX reference (independent conv / pooling implementations, f32 HIGHEST)
# ---------------------------------------------------------------------------
def deep_pool_layer_reference(x_nchw, params, need_x2=True):
    x = x_nchw.astype(jnp.float32)
    n, c, h, w = x.shape
    resl = x
    for sz, wt in zip(POOL_SIZES, params["conv_ws"]):
        hp, wp = h // sz, w // sz
        pooled = x.reshape(n, c, hp, sz, wp, sz).mean(axis=(3, 5))
        y = lax.conv_general_dilated(pooled, wt.astype(jnp.float32),
                                     window_strides=(1, 1),
                                     padding=((1, 1), (1, 1)),
                                     dimension_numbers=("NCHW", "OIHW", "NCHW"),
                                     precision=lax.Precision.HIGHEST)
        uh = jnp.asarray(_bilinear_matrix(h, hp), jnp.float32)
        uw = jnp.asarray(_bilinear_matrix(w, wp), jnp.float32)
        up = jnp.einsum("hp,ncpq,wq->nchw", uh, y, uw,
                        precision=lax.Precision.HIGHEST)
        resl = resl + up
    scale = params["bn_gamma"] / jnp.sqrt(params["bn_var"] + BN_EPS)
    shift = params["bn_beta"] - params["bn_mean"] * scale
    resl = resl * scale[None, :, None, None] + shift[None, :, None, None]
    resl = jnp.maximum(resl, 0.0)
    if need_x2:
        uh = jnp.asarray(_bilinear_matrix(2 * h, h), jnp.float32)
        uw = jnp.asarray(_bilinear_matrix(2 * w, w), jnp.float32)
        resl = jnp.einsum("hp,ncpq,wq->nchw", uh, resl, uw,
                          precision=lax.Precision.HIGHEST)
    return lax.conv_general_dilated(resl, params["conv_sum_w"].astype(jnp.float32),
                                    window_strides=(1, 1),
                                    padding=((1, 1), (1, 1)),
                                    dimension_numbers=("NCHW", "OIHW", "NCHW"),
                                    precision=lax.Precision.HIGHEST)


# ---------------------------------------------------------------------------
if __name__ == "__main__":
    N, C_IN, C_OUT, H, W = 2, 4, 8, 16, 16
    NEED_X2 = True

    key = jax.random.PRNGKey(0)
    keys = jax.random.split(key, 9)
    x = jax.random.normal(keys[0], (N, C_IN, H, W), jnp.float32)
    params = {
        "conv_ws": [0.1 * jax.random.normal(keys[1 + i], (C_IN, C_IN, 3, 3), jnp.float32)
                    for i in range(3)],
        "conv_sum_w": 0.1 * jax.random.normal(keys[4], (C_OUT, C_IN, 3, 3), jnp.float32),
        "bn_gamma": 1.0 + 0.1 * jax.random.normal(keys[5], (C_IN,), jnp.float32),
        "bn_beta": 0.1 * jax.random.normal(keys[6], (C_IN,), jnp.float32),
        "bn_mean": 0.1 * jax.random.normal(keys[7], (C_IN,), jnp.float32),
        "bn_var": jax.random.uniform(keys[8], (C_IN,), jnp.float32, 0.5, 1.5),
    }

    out = jax.block_until_ready(deep_pool_layer_forward(x, params, need_x2=NEED_X2))
    ref = jax.block_until_ready(deep_pool_layer_reference(x, params, need_x2=NEED_X2))

    assert out.shape == (N, C_OUT, 2 * H, 2 * W), out.shape
    # bf16 MXU operands (with f32 accumulation) vs a HIGHEST-precision f32 reference:
    # a 5e-2 tolerance covers the ~0.4%-per-stage bf16 rounding over ~5 chained stages.
    if not np.allclose(np.asarray(out), np.asarray(ref), rtol=5e-2, atol=5e-2):
        err = float(jnp.max(jnp.abs(out - ref)))
        raise AssertionError(f"Pallas kernel mismatch vs reference, max abs err = {err}")
    print("KERNEL_OK")
</pallas_src>

<mosaic_0001>
module attributes {stable_mosaic.version = 11 : i64} {
  func.func @kernel(%arg0: i32, %arg1: memref<1x32x64xbf16, #tpu.memory_space<vmem>>, %arg2: memref<16x32xbf16, #tpu.memory_space<vmem>>, %arg3: memref<64x32xbf16, #tpu.memory_space<vmem>>, %arg4: memref<32x48xbf16, #tpu.memory_space<vmem>>, %arg5: memref<3x32x64xbf16, #tpu.memory_space<vmem>>, %arg6: memref<8x32xbf16, #tpu.memory_space<vmem>>, %arg7: memref<64x16xbf16, #tpu.memory_space<vmem>>, %arg8: memref<32x24xbf16, #tpu.memory_space<vmem>>, %arg9: memref<3x16x64xbf16, #tpu.memory_space<vmem>>, %arg10: memref<8x32xbf16, #tpu.memory_space<vmem>>, %arg11: memref<64x8xbf16, #tpu.memory_space<vmem>>, %arg12: memref<32x24xbf16, #tpu.memory_space<vmem>>, %arg13: memref<3x8x64xbf16, #tpu.memory_space<vmem>>, %arg14: memref<1x64xf32, #tpu.memory_space<vmem>>, %arg15: memref<1x64xf32, #tpu.memory_space<vmem>>, %arg16: memref<64x96xbf16, #tpu.memory_space<vmem>>, %arg17: memref<3x64x256xbf16, #tpu.memory_space<vmem>>, %arg18: memref<1x64x256xf32, #tpu.memory_space<vmem>>) attributes {dimension_semantics = [#tpu.dimension_semantics<parallel>], iteration_bounds = array<i64: 1>, scalar_prefetch = 0 : i64, scratch_operands = 0 : i64, tpu.core_type = #tpu.core_type<tc>, window_params = [{transform_indices = @transform_0, window_bounds = array<i64: 1, 32, 64>}, {pipeline_mode = #tpu.pipeline_mode<synchronous>, transform_indices = @transform_1, window_bounds = array<i64: 16, 32>}, {pipeline_mode = #tpu.pipeline_mode<synchronous>, transform_indices = @transform_2, window_bounds = array<i64: 64, 32>}, {pipeline_mode = #tpu.pipeline_mode<synchronous>, transform_indices = @transform_3, window_bounds = array<i64: 32, 48>}, {pipeline_mode = #tpu.pipeline_mode<synchronous>, transform_indices = @transform_4, window_bounds = array<i64: 3, 32, 64>}, {pipeline_mode = #tpu.pipeline_mode<synchronous>, transform_indices = @transform_5, window_bounds = array<i64: 8, 32>}, {pipeline_mode = #tpu.pipeline_mode<synchronous>, transform_indices = @transform_6, window_bounds = array<i64: 64, 16>}, {pipeline_mode = #tpu.pipeline_mode<synchronous>, transform_indices = @transform_7, window_bounds = array<i64: 32, 24>}, {pipeline_mode = #tpu.pipeline_mode<synchronous>, transform_indices = @transform_8, window_bounds = array<i64: 3, 16, 64>}, {pipeline_mode = #tpu.pipeline_mode<synchronous>, transform_indices = @transform_9, window_bounds = array<i64: 8, 32>}, {pipeline_mode = #tpu.pipeline_mode<synchronous>, transform_indices = @transform_10, window_bounds = array<i64: 64, 8>}, {pipeline_mode = #tpu.pipeline_mode<synchronous>, transform_indices = @transform_11, window_bounds = array<i64: 32, 24>}, {pipeline_mode = #tpu.pipeline_mode<synchronous>, transform_indices = @transform_12, window_bounds = array<i64: 3, 8, 64>}, {pipeline_mode = #tpu.pipeline_mode<synchronous>, transform_indices = @transform_13, window_bounds = array<i64: 1, 64>}, {pipeline_mode = #tpu.pipeline_mode<synchronous>, transform_indices = @transform_14, window_bounds = array<i64: 1, 64>}, {pipeline_mode = #tpu.pipeline_mode<synchronous>, transform_indices = @transform_15, window_bounds = array<i64: 64, 96>}, {pipeline_mode = #tpu.pipeline_mode<synchronous>, transform_indices = @transform_16, window_bounds = array<i64: 3, 64, 256>}, {transform_indices = @transform_17, window_bounds = array<i64: 1, 64, 256>}]} {
    %c0 = arith.constant 0 : index
    %c0_0 = arith.constant 0 : index
    %c0_1 = arith.constant 0 : index
    %0 = vector.load %arg1[%c0, %c0_0, %c0_1] : memref<1x32x64xbf16, #tpu.memory_space<vmem>>, vector<1x32x64xbf16>
    %1 = vector.shape_cast %0 : vector<1x32x64xbf16> to vector<32x64xbf16>
    %2 = arith.extf %1 : vector<32x64xbf16> to vector<32x64xf32>
    %c0_2 = arith.constant 0 : index
    %c0_3 = arith.constant 0 : index
    %3 = vector.load %arg2[%c0_2, %c0_3] : memref<16x32xbf16, #tpu.memory_space<vmem>>, vector<16x32xbf16>
    %cst = arith.constant dense<0.000000e+00> : vector<16x64xf32>
    %4 = tpu.matmul %3, %1, %cst {dimension_numbers = #tpu.dot_dimension_numbers<[1], [0], [0], [1], [0, 0, 1, 1], [], []>} : vector<16x32xbf16>, vector<32x64xbf16>, vector<16x64xf32> -> vector<16x64xf32>
    %5 = arith.truncf %4 : vector<16x64xf32> to vector<16x64xbf16>
    %c0_4 = arith.constant 0 : index
    %c0_5 = arith.constant 0 : index
    %6 = vector.load %arg3[%c0_4, %c0_5] : memref<64x32xbf16, #tpu.memory_space<vmem>>, vector<64x32xbf16>
    %cst_6 = arith.constant dense<0.000000e+00> : vector<16x32xf32>
    %7 = tpu.matmul %5, %6, %cst_6 {dimension_numbers = #tpu.dot_dimension_numbers<[1], [0], [0], [1], [0, 0, 1, 1], [], []>} : vector<16x64xbf16>, vector<64x32xbf16>, vector<16x32xf32> -> vector<16x32xf32>
    %8 = arith.truncf %7 : vector<16x32xf32> to vector<16x32xbf16>
    %c0_7 = arith.constant 0 : index
    %c0_8 = arith.constant 0 : index
    %c0_9 = arith.constant 0 : index
    %9 = vector.load %arg5[%c0_7, %c0_8, %c0_9] : memref<3x32x64xbf16, #tpu.memory_space<vmem>>, vector<1x32x64xbf16>
    %10 = vector.shape_cast %9 : vector<1x32x64xbf16> to vector<32x64xbf16>
    %cst_10 = arith.constant dense<0.000000e+00> : vector<16x64xf32>
    %11 = tpu.matmul %8, %10, %cst_10 {dimension_numbers = #tpu.dot_dimension_numbers<[1], [0], [0], [1], [0, 0, 1, 1], [], []>} : vector<16x32xbf16>, vector<32x64xbf16>, vector<16x64xf32> -> vector<16x64xf32>
    %c1 = arith.constant 1 : index
    %c0_11 = arith.constant 0 : index
    %c0_12 = arith.constant 0 : index
    %12 = vector.load %arg5[%c1, %c0_11, %c0_12] : memref<3x32x64xbf16, #tpu.memory_space<vmem>>, vector<1x32x64xbf16>
    %13 = vector.shape_cast %12 : vector<1x32x64xbf16> to vector<32x64xbf16>
    %cst_13 = arith.constant dense<0.000000e+00> : vector<16x64xf32>
    %14 = tpu.matmul %8, %13, %cst_13 {dimension_numbers = #tpu.dot_dimension_numbers<[1], [0], [0], [1], [0, 0, 1, 1], [], []>} : vector<16x32xbf16>, vector<32x64xbf16>, vector<16x64xf32> -> vector<16x64xf32>
    %c2 = arith.constant 2 : index
    %c0_14 = arith.constant 0 : index
    %c0_15 = arith.constant 0 : index
    %15 = vector.load %arg5[%c2, %c0_14, %c0_15] : memref<3x32x64xbf16, #tpu.memory_space<vmem>>, vector<1x32x64xbf16>
    %16 = vector.shape_cast %15 : vector<1x32x64xbf16> to vector<32x64xbf16>
    %cst_16 = arith.constant dense<0.000000e+00> : vector<16x64xf32>
    %17 = tpu.matmul %8, %16, %cst_16 {dimension_numbers = #tpu.dot_dimension_numbers<[1], [0], [0], [1], [0, 0, 1, 1], [], []>} : vector<16x32xbf16>, vector<32x64xbf16>, vector<16x64xf32> -> vector<16x64xf32>
    %18 = tpu.concatenate %11, %14, %17 in 0 : vector<16x64xf32>, vector<16x64xf32>, vector<16x64xf32> -> vector<48x64xf32>
    %19 = arith.truncf %18 : vector<48x64xf32> to vector<48x64xbf16>
    %c0_17 = arith.constant 0 : index
    %c0_18 = arith.constant 0 : index
    %20 = vector.load %arg4[%c0_17, %c0_18] : memref<32x48xbf16, #tpu.memory_space<vmem>>, vector<32x48xbf16>
    %cst_19 = arith.constant dense<0.000000e+00> : vector<32x64xf32>
    %21 = tpu.matmul %20, %19, %cst_19 {dimension_numbers = #tpu.dot_dimension_numbers<[1], [0], [0], [1], [0, 0, 1, 1], [], []>} : vector<32x48xbf16>, vector<48x64xbf16>, vector<32x64xf32> -> vector<32x64xf32>
    %22 = arith.addf %2, %21 : vector<32x64xf32>
    %c0_20 = arith.constant 0 : index
    %c0_21 = arith.constant 0 : index
    %23 = vector.load %arg6[%c0_20, %c0_21] : memref<8x32xbf16, #tpu.memory_space<vmem>>, vector<8x32xbf16>
    %cst_22 = arith.constant dense<0.000000e+00> : vector<8x64xf32>
    %24 = tpu.matmul %23, %1, %cst_22 {dimension_numbers = #tpu.dot_dimension_numbers<[1], [0], [0], [1], [0, 0, 1, 1], [], []>} : vector<8x32xbf16>, vector<32x64xbf16>, vector<8x64xf32> -> vector<8x64xf32>
    %25 = arith.truncf %24 : vector<8x64xf32> to vector<8x64xbf16>
    %c0_23 = arith.constant 0 : index
    %c0_24 = arith.constant 0 : index
    %26 = vector.load %arg7[%c0_23, %c0_24] : memref<64x16xbf16, #tpu.memory_space<vmem>>, vector<64x16xbf16>
    %cst_25 = arith.constant dense<0.000000e+00> : vector<8x16xf32>
    %27 = tpu.matmul %25, %26, %cst_25 {dimension_numbers = #tpu.dot_dimension_numbers<[1], [0], [0], [1], [0, 0, 1, 1], [], []>} : vector<8x64xbf16>, vector<64x16xbf16>, vector<8x16xf32> -> vector<8x16xf32>
    %28 = arith.truncf %27 : vector<8x16xf32> to vector<8x16xbf16>
    %c0_26 = arith.constant 0 : index
    %c0_27 = arith.constant 0 : index
    %c0_28 = arith.constant 0 : index
    %29 = vector.load %arg9[%c0_26, %c0_27, %c0_28] : memref<3x16x64xbf16, #tpu.memory_space<vmem>>, vector<1x16x64xbf16>
    %30 = vector.shape_cast %29 : vector<1x16x64xbf16> to vector<16x64xbf16>
    %cst_29 = arith.constant dense<0.000000e+00> : vector<8x64xf32>
    %31 = tpu.matmul %28, %30, %cst_29 {dimension_numbers = #tpu.dot_dimension_numbers<[1], [0], [0], [1], [0, 0, 1, 1], [], []>} : vector<8x16xbf16>, vector<16x64xbf16>, vector<8x64xf32> -> vector<8x64xf32>
    %c1_30 = arith.constant 1 : index
    %c0_31 = arith.constant 0 : index
    %c0_32 = arith.constant 0 : index
    %32 = vector.load %arg9[%c1_30, %c0_31, %c0_32] : memref<3x16x64xbf16, #tpu.memory_space<vmem>>, vector<1x16x64xbf16>
    %33 = vector.shape_cast %32 : vector<1x16x64xbf16> to vector<16x64xbf16>
    %cst_33 = arith.constant dense<0.000000e+00> : vector<8x64xf32>
    %34 = tpu.matmul %28, %33, %cst_33 {dimension_numbers = #tpu.dot_dimension_numbers<[1], [0], [0], [1], [0, 0, 1, 1], [], []>} : vector<8x16xbf16>, vector<16x64xbf16>, vector<8x64xf32> -> vector<8x64xf32>
    %c2_34 = arith.constant 2 : index
    %c0_35 = arith.constant 0 : index
    %c0_36 = arith.constant 0 : index
    %35 = vector.load %arg9[%c2_34, %c0_35, %c0_36] : memref<3x16x64xbf16, #tpu.memory_space<vmem>>, vector<1x16x64xbf16>
    %36 = vector.shape_cast %35 : vector<1x16x64xbf16> to vector<16x64xbf16>
    %cst_37 = arith.constant dense<0.000000e+00> : vector<8x64xf32>
    %37 = tpu.matmul %28, %36, %cst_37 {dimension_numbers = #tpu.dot_dimension_numbers<[1], [0], [0], [1], [0, 0, 1, 1], [], []>} : vector<8x16xbf16>, vector<16x64xbf16>, vector<8x64xf32> -> vector<8x64xf32>
    %38 = tpu.concatenate %31, %34, %37 in 0 : vector<8x64xf32>, vector<8x64xf32>, vector<8x64xf32> -> vector<24x64xf32>
    %39 = arith.truncf %38 : vector<24x64xf32> to vector<24x64xbf16>
    %c0_38 = arith.constant 0 : index
    %c0_39 = arith.constant 0 : index
    %40 = vector.load %arg8[%c0_38, %c0_39] : memref<32x24xbf16, #tpu.memory_space<vmem>>, vector<32x24xbf16>
    %cst_40 = arith.constant dense<0.000000e+00> : vector<32x64xf32>
    %41 = tpu.matmul %40, %39, %cst_40 {dimension_numbers = #tpu.dot_dimension_numbers<[1], [0], [0], [1], [0, 0, 1, 1], [], []>} : vector<32x24xbf16>, vector<24x64xbf16>, vector<32x64xf32> -> vector<32x64xf32>
    %42 = arith.addf %22, %41 : vector<32x64xf32>
    %c0_41 = arith.constant 0 : index
    %c0_42 = arith.constant 0 : index
    %43 = vector.load %arg10[%c0_41, %c0_42] : memref<8x32xbf16, #tpu.memory_space<vmem>>, vector<8x32xbf16>
    %cst_43 = arith.constant dense<0.000000e+00> : vector<8x64xf32>
    %44 = tpu.matmul %43, %1, %cst_43 {dimension_numbers = #tpu.dot_dimension_numbers<[1], [0], [0], [1], [0, 0, 1, 1], [], []>} : vector<8x32xbf16>, vector<32x64xbf16>, vector<8x64xf32> -> vector<8x64xf32>
    %45 = arith.truncf %44 : vector<8x64xf32> to vector<8x64xbf16>
    %c0_44 = arith.constant 0 : index
    %c0_45 = arith.constant 0 : index
    %46 = vector.load %arg11[%c0_44, %c0_45] : memref<64x8xbf16, #tpu.memory_space<vmem>>, vector<64x8xbf16>
    %cst_46 = arith.constant dense<0.000000e+00> : vector<8x8xf32>
    %47 = tpu.matmul %45, %46, %cst_46 {dimension_numbers = #tpu.dot_dimension_numbers<[1], [0], [0], [1], [0, 0, 1, 1], [], []>} : vector<8x64xbf16>, vector<64x8xbf16>, vector<8x8xf32> -> vector<8x8xf32>
    %48 = arith.truncf %47 : vector<8x8xf32> to vector<8x8xbf16>
    %c0_47 = arith.constant 0 : index
    %c0_48 = arith.constant 0 : index
    %c0_49 = arith.constant 0 : index
    %49 = vector.load %arg13[%c0_47, %c0_48, %c0_49] : memref<3x8x64xbf16, #tpu.memory_space<vmem>>, vector<1x8x64xbf16>
    %50 = vector.shape_cast %49 : vector<1x8x64xbf16> to vector<8x64xbf16>
    %cst_50 = arith.constant dense<0.000000e+00> : vector<8x64xf32>
    %51 = tpu.matmul %48, %50, %cst_50 {dimension_numbers = #tpu.dot_dimension_numbers<[1], [0], [0], [1], [0, 0, 1, 1], [], []>} : vector<8x8xbf16>, vector<8x64xbf16>, vector<8x64xf32> -> vector<8x64xf32>
    %c1_51 = arith.constant 1 : index
    %c0_52 = arith.constant 0 : index
    %c0_53 = arith.constant 0 : index
    %52 = vector.load %arg13[%c1_51, %c0_52, %c0_53] : memref<3x8x64xbf16, #tpu.memory_space<vmem>>, vector<1x8x64xbf16>
    %53 = vector.shape_cast %52 : vector<1x8x64xbf16> to vector<8x64xbf16>
    %cst_54 = arith.constant dense<0.000000e+00> : vector<8x64xf32>
    %54 = tpu.matmul %48, %53, %cst_54 {dimension_numbers = #tpu.dot_dimension_numbers<[1], [0], [0], [1], [0, 0, 1, 1], [], []>} : vector<8x8xbf16>, vector<8x64xbf16>, vector<8x64xf32> -> vector<8x64xf32>
    %c2_55 = arith.constant 2 : index
    %c0_56 = arith.constant 0 : index
    %c0_57 = arith.constant 0 : index
    %55 = vector.load %arg13[%c2_55, %c0_56, %c0_57] : memref<3x8x64xbf16, #tpu.memory_space<vmem>>, vector<1x8x64xbf16>
    %56 = vector.shape_cast %55 : vector<1x8x64xbf16> to vector<8x64xbf16>
    %cst_58 = arith.constant dense<0.000000e+00> : vector<8x64xf32>
    %57 = tpu.matmul %48, %56, %cst_58 {dimension_numbers = #tpu.dot_dimension_numbers<[1], [0], [0], [1], [0, 0, 1, 1], [], []>} : vector<8x8xbf16>, vector<8x64xbf16>, vector<8x64xf32> -> vector<8x64xf32>
    %58 = tpu.concatenate %51, %54, %57 in 0 : vector<8x64xf32>, vector<8x64xf32>, vector<8x64xf32> -> vector<24x64xf32>
    %59 = arith.truncf %58 : vector<24x64xf32> to vector<24x64xbf16>
    %c0_59 = arith.constant 0 : index
    %c0_60 = arith.constant 0 : index
    %60 = vector.load %arg12[%c0_59, %c0_60] : memref<32x24xbf16, #tpu.memory_space<vmem>>, vector<32x24xbf16>
    %cst_61 = arith.constant dense<0.000000e+00> : vector<32x64xf32>
    %61 = tpu.matmul %60, %59, %cst_61 {dimension_numbers = #tpu.dot_dimension_numbers<[1], [0], [0], [1], [0, 0, 1, 1], [], []>} : vector<32x24xbf16>, vector<24x64xbf16>, vector<32x64xf32> -> vector<32x64xf32>
    %62 = arith.addf %42, %61 : vector<32x64xf32>
    %c0_62 = arith.constant 0 : index
    %c0_63 = arith.constant 0 : index
    %63 = vector.load %arg14[%c0_62, %c0_63] : memref<1x64xf32, #tpu.memory_space<vmem>>, vector<1x64xf32>
    %64 = vector.broadcast %63 : vector<1x64xf32> to vector<32x64xf32>
    %65 = arith.mulf %62, %64 : vector<32x64xf32>
    %c0_64 = arith.constant 0 : index
    %c0_65 = arith.constant 0 : index
    %66 = vector.load %arg15[%c0_64, %c0_65] : memref<1x64xf32, #tpu.memory_space<vmem>>, vector<1x64xf32>
    %67 = vector.broadcast %66 : vector<1x64xf32> to vector<32x64xf32>
    %68 = arith.addf %65, %67 : vector<32x64xf32>
    %cst_66 = arith.constant 0.000000e+00 : f32
    %69 = vector.broadcast %cst_66 : f32 to vector<32x64xf32>
    %70 = arith.maximumf %68, %69 : vector<32x64xf32>
    %71 = arith.truncf %70 : vector<32x64xf32> to vector<32x64xbf16>
    %c0_67 = arith.constant 0 : index
    %c0_68 = arith.constant 0 : index
    %c0_69 = arith.constant 0 : index
    %72 = vector.load %arg17[%c0_67, %c0_68, %c0_69] : memref<3x64x256xbf16, #tpu.memory_space<vmem>>, vector<1x64x256xbf16>
    %73 = vector.shape_cast %72 : vector<1x64x256xbf16> to vector<64x256xbf16>
    %cst_70 = arith.constant dense<0.000000e+00> : vector<32x256xf32>
    %74 = tpu.matmul %71, %73, %cst_70 {dimension_numbers = #tpu.dot_dimension_numbers<[1], [0], [0], [1], [0, 0, 1, 1], [], []>} : vector<32x64xbf16>, vector<64x256xbf16>, vector<32x256xf32> -> vector<32x256xf32>
    %c1_71 = arith.constant 1 : index
    %c0_72 = arith.constant 0 : index
    %c0_73 = arith.constant 0 : index
    %75 = vector.load %arg17[%c1_71, %c0_72, %c0_73] : memref<3x64x256xbf16, #tpu.memory_space<vmem>>, vector<1x64x256xbf16>
    %76 = vector.shape_cast %75 : vector<1x64x256xbf16> to vector<64x256xbf16>
    %cst_74 = arith.constant dense<0.000000e+00> : vector<32x256xf32>
    %77 = tpu.matmul %71, %76, %cst_74 {dimension_numbers = #tpu.dot_dimension_numbers<[1], [0], [0], [1], [0, 0, 1, 1], [], []>} : vector<32x64xbf16>, vector<64x256xbf16>, vector<32x256xf32> -> vector<32x256xf32>
    %c2_75 = arith.constant 2 : index
    %c0_76 = arith.constant 0 : index
    %c0_77 = arith.constant 0 : index
    %78 = vector.load %arg17[%c2_75, %c0_76, %c0_77] : memref<3x64x256xbf16, #tpu.memory_space<vmem>>, vector<1x64x256xbf16>
    %79 = vector.shape_cast %78 : vector<1x64x256xbf16> to vector<64x256xbf16>
    %cst_78 = arith.constant dense<0.000000e+00> : vector<32x256xf32>
    %80 = tpu.matmul %71, %79, %cst_78 {dimension_numbers = #tpu.dot_dimension_numbers<[1], [0], [0], [1], [0, 0, 1, 1], [], []>} : vector<32x64xbf16>, vector<64x256xbf16>, vector<32x256xf32> -> vector<32x256xf32>
    %81 = tpu.concatenate %74, %77, %80 in 0 : vector<32x256xf32>, vector<32x256xf32>, vector<32x256xf32> -> vector<96x256xf32>
    %82 = arith.truncf %81 : vector<96x256xf32> to vector<96x256xbf16>
    %c0_79 = arith.constant 0 : index
    %c0_80 = arith.constant 0 : index
    %83 = vector.load %arg16[%c0_79, %c0_80] : memref<64x96xbf16, #tpu.memory_space<vmem>>, vector<64x96xbf16>
    %cst_81 = arith.constant dense<0.000000e+00> : vector<64x256xf32>
    %84 = tpu.matmul %83, %82, %cst_81 {dimension_numbers = #tpu.dot_dimension_numbers<[1], [0], [0], [1], [0, 0, 1, 1], [], []>} : vector<64x96xbf16>, vector<96x256xbf16>, vector<64x256xf32> -> vector<64x256xf32>
    %c0_82 = arith.constant 0 : index
    %c0_83 = arith.constant 0 : index
    %c0_84 = arith.constant 0 : index
    %85 = vector.load %arg18[%c0_82, %c0_83, %c0_84] : memref<1x64x256xf32, #tpu.memory_space<vmem>>, vector<1x64x256xf32>
    %86 = vector.shape_cast %85 : vector<1x64x256xf32> to vector<64x256xf32>
    %87 = vector.shape_cast %84 : vector<64x256xf32> to vector<1x64x256xf32>
    tpu.vector_store %arg18[%c0_82, %c0_83, %c0_84], %87 {strides = array<i32>} : memref<1x64x256xf32, #tpu.memory_space<vmem>>, vector<1x64x256xf32>,
    return
  }
  func.func @transform_0(%arg0: i32) -> (i32, i32, i32) {
    %c0_i32 = arith.constant 0 : i32
    %c0_i32_0 = arith.constant 0 : i32
    %c0_i32_1 = arith.constant 0 : i32
    return %arg0, %c0_i32, %c0_i32_0 : i32, i32, i32
  }
  func.func @transform_1(%arg0: i32) -> (i32, i32) {
    %c0_i32 = arith.constant 0 : i32
    %c0_i32_0 = arith.constant 0 : i32
    %c0_i32_1 = arith.constant 0 : i32
    return %c0_i32, %c0_i32_0 : i32, i32
  }
  func.func @transform_2(%arg0: i32) -> (i32, i32) {
    %c0_i32 = arith.constant 0 : i32
    %c0_i32_0 = arith.constant 0 : i32
    %c0_i32_1 = arith.constant 0 : i32
    return %c0_i32, %c0_i32_0 : i32, i32
  }
  func.func @transform_3(%arg0: i32) -> (i32, i32) {
    %c0_i32 = arith.constant 0 : i32
    %c0_i32_0 = arith.constant 0 : i32
    %c0_i32_1 = arith.constant 0 : i32
    return %c0_i32, %c0_i32_0 : i32, i32
  }
  func.func @transform_4(%arg0: i32) -> (i32, i32, i32) {
    %c0_i32 = arith.constant 0 : i32
    %c0_i32_0 = arith.constant 0 : i32
    %c0_i32_1 = arith.constant 0 : i32
    %c0_i32_2 = arith.constant 0 : i32
    return %c0_i32, %c0_i32_0, %c0_i32_1 : i32, i32, i32
  }
  func.func @transform_5(%arg0: i32) -> (i32, i32) {
    %c0_i32 = arith.constant 0 : i32
    %c0_i32_0 = arith.constant 0 : i32
    %c0_i32_1 = arith.constant 0 : i32
    return %c0_i32, %c0_i32_0 : i32, i32
  }
  func.func @transform_6(%arg0: i32) -> (i32, i32) {
    %c0_i32 = arith.constant 0 : i32
    %c0_i32_0 = arith.constant 0 : i32
    %c0_i32_1 = arith.constant 0 : i32
    return %c0_i32, %c0_i32_0 : i32, i32
  }
  func.func @transform_7(%arg0: i32) -> (i32, i32) {
    %c0_i32 = arith.constant 0 : i32
    %c0_i32_0 = arith.constant 0 : i32
    %c0_i32_1 = arith.constant 0 : i32
    return %c0_i32, %c0_i32_0 : i32, i32
  }
  func.func @transform_8(%arg0: i32) -> (i32, i32, i32) {
    %c0_i32 = arith.constant 0 : i32
    %c0_i32_0 = arith.constant 0 : i32
    %c0_i32_1 = arith.constant 0 : i32
    %c0_i32_2 = arith.constant 0 : i32
    return %c0_i32, %c0_i32_0, %c0_i32_1 : i32, i32, i32
  }
  func.func @transform_9(%arg0: i32) -> (i32, i32) {
    %c0_i32 = arith.constant 0 : i32
    %c0_i32_0 = arith.constant 0 : i32
    %c0_i32_1 = arith.constant 0 : i32
    return %c0_i32, %c0_i32_0 : i32, i32
  }
  func.func @transform_10(%arg0: i32) -> (i32, i32) {
    %c0_i32 = arith.constant 0 : i32
    %c0_i32_0 = arith.constant 0 : i32
    %c0_i32_1 = arith.constant 0 : i32
    return %c0_i32, %c0_i32_0 : i32, i32
  }
  func.func @transform_11(%arg0: i32) -> (i32, i32) {
    %c0_i32 = arith.constant 0 : i32
    %c0_i32_0 = arith.constant 0 : i32
    %c0_i32_1 = arith.constant 0 : i32
    return %c0_i32, %c0_i32_0 : i32, i32
  }
  func.func @transform_12(%arg0: i32) -> (i32, i32, i32) {
    %c0_i32 = arith.constant 0 : i32
    %c0_i32_0 = arith.constant 0 : i32
    %c0_i32_1 = arith.constant 0 : i32
    %c0_i32_2 = arith.constant 0 : i32
    return %c0_i32, %c0_i32_0, %c0_i32_1 : i32, i32, i32
  }
  func.func @transform_13(%arg0: i32) -> (i32, i32) {
    %c0_i32 = arith.constant 0 : i32
    %c0_i32_0 = arith.constant 0 : i32
    %c0_i32_1 = arith.constant 0 : i32
    return %c0_i32, %c0_i32_0 : i32, i32
  }
  func.func @transform_14(%arg0: i32) -> (i32, i32) {
    %c0_i32 = arith.constant 0 : i32
    %c0_i32_0 = arith.constant 0 : i32
    %c0_i32_1 = arith.constant 0 : i32
    return %c0_i32, %c0_i32_0 : i32, i32
  }
  func.func @transform_15(%arg0: i32) -> (i32, i32) {
    %c0_i32 = arith.constant 0 : i32
    %c0_i32_0 = arith.constant 0 : i32
    %c0_i32_1 = arith.constant 0 : i32
    return %c0_i32, %c0_i32_0 : i32, i32
  }
  func.func @transform_16(%arg0: i32) -> (i32, i32, i32) {
    %c0_i32 = arith.constant 0 : i32
    %c0_i32_0 = arith.constant 0 : i32
    %c0_i32_1 = arith.constant 0 : i32
    %c0_i32_2 = arith.constant 0 : i32
    return %c0_i32, %c0_i32_0, %c0_i32_1 : i32, i32, i32
  }
  func.func @transform_17(%arg0: i32) -> (i32, i32, i32) {
    %c0_i32 = arith.constant 0 : i32
    %c0_i32_0 = arith.constant 0 : i32
    %c0_i32_1 = arith.constant 0 : i32
    return %arg0, %c0_i32, %c0_i32_0 : i32, i32, i32
  }
}

</mosaic_0001>

<llo_original>
// kernel: tpu_custom_call.1
$region0: #{tpu_custom_call.1}
  #allocation0 [shape = 'u32[]', space=smem, size = 0x4, offset = 0x4, fixed_abs, tag = 'smem constant byte address 0x4 - core index']
  #allocation1 [shape = 'u32[72,128]{1,0:T(1,128)}', space=vmem, size = 0x9000, scoped, tag = 'internal scratch']
  %s0 = inlined_call_operand.vmem [shape: bf16[1,32,64], index: 0, kind: input, shape index: {}]
  %s1 = inlined_call_operand.hbm [shape: bf16[16,32], index: 1, kind: input, shape index: {}]
  %s2 = inlined_call_operand.vmem [shape: bf16[64,32], index: 2, kind: input, shape index: {}]
  %s3 = inlined_call_operand.vmem [shape: bf16[32,48], index: 3, kind: input, shape index: {}]
  %s4 = inlined_call_operand.vmem [shape: bf16[3,32,64], index: 4, kind: input, shape index: {}]
  %s5 = inlined_call_operand.hbm [shape: bf16[8,32], index: 5, kind: input, shape index: {}]
  %s6 = inlined_call_operand.vmem [shape: bf16[64,16], index: 6, kind: input, shape index: {}]
  %s7 = inlined_call_operand.vmem [shape: bf16[32,24], index: 7, kind: input, shape index: {}]
  %s8 = inlined_call_operand.vmem [shape: bf16[3,16,64], index: 8, kind: input, shape index: {}]
  %s9 = inlined_call_operand.hbm [shape: bf16[8,32], index: 9, kind: input, shape index: {}]
  %s10 = inlined_call_operand.vmem [shape: bf16[64,8], index: 10, kind: input, shape index: {}]
  %s11 = inlined_call_operand.vmem [shape: bf16[32,24], index: 11, kind: input, shape index: {}]
  %s12 = inlined_call_operand.vmem [shape: bf16[3,8,64], index: 12, kind: input, shape index: {}]
  %s13 = inlined_call_operand.vmem [shape: f32[1,64], index: 13, kind: input, shape index: {}]
  %s14 = inlined_call_operand.vmem [shape: f32[1,64], index: 14, kind: input, shape index: {}]
  %s15 = inlined_call_operand.vmem [shape: bf16[64,96], index: 15, kind: input, shape index: {}]
  %s16 = inlined_call_operand.hbm [shape: bf16[3,64,256], index: 16, kind: input, shape index: {}]
  %s17 = inlined_call_operand.hbm [shape: f32[1,64,256], index: 17, kind: output, shape index: {}]
  %s18 = sld [smem:[#allocation0]]
  $region94: #{tpu_custom_call.1} parent=0
    _
  %s20 = ssub.s32 1, %s18
  %s21 = scalar_select 0, %s20, %s18
  $region1: #{tpu_custom_call.1} parent=0
    #allocation2 [shape = 'u8[4096]{0}', space=vmem, size = 0x1000, scoped, tag = 'input window, operand 1, single buffered']
    #allocation3 [shape = 's32[1]{0}', space=sflag, size = 0x4, scoped, tag = 'scoped memory for tpu_custom_call.1']
    #allocation4 [shape = 's32[1]{0}', space=sflag, size = 0x4, scoped, tag = 'scoped memory for tpu_custom_call.1']
    #allocation5 [shape = 'u8[2048]{0}', space=vmem, size = 0x800, scoped, tag = 'input window, operand 5, single buffered']
    #allocation6 [shape = 's32[1]{0}', space=sflag, size = 0x4, scoped, tag = 'scoped memory for tpu_custom_call.1']
    #allocation7 [shape = 'u8[2048]{0}', space=vmem, size = 0x800, scoped, tag = 'input window, operand 9, single buffered']
    #allocation8 [shape = 'u8[98304]{0}', space=vmem, size = 0x18000, scoped, tag = 'input window, operand 16, single buffered']
    #allocation9 [shape = 's32[1]{0}', space=sflag, size = 0x4, scoped, tag = 'scoped memory for tpu_custom_call.1']
    #allocation10 [shape = 'u8[65536]{0}', space=vmem, size = 0x10000, scoped, tag = 'output window, operand 0, single buffered']
    %22 = vsyncpa [#allocation3], 0
    %23 = vsyncpa [#allocation6], 0
    %24 = vsyncpa [#allocation9], 0
    %25 = vsyncpa [#allocation4], 0
    // Predicated region
    $region2: #{tpu_custom_call.1} parent=1 // pred_check
      _
    $region3: #{tpu_custom_call.1} parent=1 // pred_check_branch
      %27 = sbr.rel (0) target = $region5
    $region4: #{tpu_custom_call.1} parent=1 // pred_region
      _
    $region5: #{tpu_custom_call.1} parent=1 // pred_fallthru
      _
    // Predicated region
    $region6: #{tpu_custom_call.1} parent=1 // pred_check
      _
    $region7: #{tpu_custom_call.1} parent=1 // pred_check_branch
      %29 = sbr.rel (0) target = $region9
    $region8: #{tpu_custom_call.1} parent=1 // pred_region
      %31 = vsyncadd [#allocation3], 0
      %s32 = sshll.u32 %s1, 4
      %s33 = int_to_ptr.hbm [resolvable:$true] %s32
      %s34 = sshll.u32 [#allocation2], 4
      %s35 = int_to_ptr.vmem [resolvable:$true] %s34
      %40 = dma.hbm_to_vmem [thread:$0]  %s33, 128, %s35, [#allocation3], 64, 64, 4
    $region9: #{tpu_custom_call.1} parent=1 // pred_fallthru
      _
    // Predicated region
    $region10: #{tpu_custom_call.1} parent=1 // pred_check
      _
    $region11: #{tpu_custom_call.1} parent=1 // pred_check_branch
      %42 = sbr.rel (0) target = $region13
    $region12: #{tpu_custom_call.1} parent=1 // pred_region
      _
    $region13: #{tpu_custom_call.1} parent=1 // pred_fallthru
      _
    // Predicated region
    $region14: #{tpu_custom_call.1} parent=1 // pred_check
      _
    $region15: #{tpu_custom_call.1} parent=1 // pred_check_branch
      %44 = sbr.rel (0) target = $region17
    $region16: #{tpu_custom_call.1} parent=1 // pred_region
      _
    $region17: #{tpu_custom_call.1} parent=1 // pred_fallthru
      _
    // Predicated region
    $region18: #{tpu_custom_call.1} parent=1 // pred_check
      _
    $region19: #{tpu_custom_call.1} parent=1 // pred_check_branch
      %46 = sbr.rel (0) target = $region21
    $region20: #{tpu_custom_call.1} parent=1 // pred_region
      _
    $region21: #{tpu_custom_call.1} parent=1 // pred_fallthru
      _
    // Predicated region
    $region22: #{tpu_custom_call.1} parent=1 // pred_check
      _
    $region23: #{tpu_custom_call.1} parent=1 // pred_check_branch
      %48 = sbr.rel (0) target = $region25
    $region24: #{tpu_custom_call.1} parent=1 // pred_region
      %50 = vsyncadd [#allocation6], 0
      %s52 = sshll.u32 %s5, 4
      %s53 = int_to_ptr.hbm [resolvable:$true] %s52
      %s54 = sshll.u32 [#allocation5], 4
      %s55 = int_to_ptr.vmem [resolvable:$true] %s54
      %57 = dma.hbm_to_vmem [thread:$0]  %s53, 64, %s55, [#allocation6]
    $region25: #{tpu_custom_call.1} parent=1 // pred_fallthru
      _
    // Predicated region
    $region26: #{tpu_custom_call.1} parent=1 // pred_check
      _
    $region27: #{tpu_custom_call.1} parent=1 // pred_check_branch
      %59 = sbr.rel (0) target = $region29
    $region28: #{tpu_custom_call.1} parent=1 // pred_region
      _
    $region29: #{tpu_custom_call.1} parent=1 // pred_fallthru
      _
    // Predicated region
    $region30: #{tpu_custom_call.1} parent=1 // pred_check
      _
    $region31: #{tpu_custom_call.1} parent=1 // pred_check_branch
      %61 = sbr.rel (0) target = $region33
    $region32: #{tpu_custom_call.1} parent=1 // pred_region
      _
    $region33: #{tpu_custom_call.1} parent=1 // pred_fallthru
      _
    // Predicated region
    $region34: #{tpu_custom_call.1} parent=1 // pred_check
      _
    $region35: #{tpu_custom_call.1} parent=1 // pred_check_branch
      %63 = sbr.rel (0) target = $region37
    $region36: #{tpu_custom_call.1} parent=1 // pred_region
      _
    $region37: #{tpu_custom_call.1} parent=1 // pred_fallthru
      _
    // Predicated region
    $region38: #{tpu_custom_call.1} parent=1 // pred_check
      _
    $region39: #{tpu_custom_call.1} parent=1 // pred_check_branch
      %65 = sbr.rel (0) target = $region41
    $region40: #{tpu_custom_call.1} parent=1 // pred_region
      %67 = vsyncadd [#allocation6], 0
      %s69 = sshll.u32 %s9, 4
      %s70 = int_to_ptr.hbm [resolvable:$true] %s69
      %s71 = sshll.u32 [#allocation7], 4
      %s72 = int_to_ptr.vmem [resolvable:$true] %s71
      %74 = dma.hbm_to_vmem [thread:$0]  %s70, 64, %s72, [#allocation6]
    $region41: #{tpu_custom_call.1} parent=1 // pred_fallthru
      _
    // Predicated region
    $region42: #{tpu_custom_call.1} parent=1 // pred_check
      _
    $region43: #{tpu_custom_call.1} parent=1 // pred_check_branch
      %76 = sbr.rel (0) target = $region45
    $region44: #{tpu_custom_call.1} parent=1 // pred_region
      _
    $region45: #{tpu_custom_call.1} parent=1 // pred_fallthru
      _
    // Predicated region
    $region46: #{tpu_custom_call.1} parent=1 // pred_check
      _
    $region47: #{tpu_custom_call.1} parent=1 // pred_check_branch
      %78 = sbr.rel (0) target = $region49
    $region48: #{tpu_custom_call.1} parent=1 // pred_region
      _
    $region49: #{tpu_custom_call.1} parent=1 // pred_fallthru
      _
    // Predicated region
    $region50: #{tpu_custom_call.1} parent=1 // pred_check
      _
    $region51: #{tpu_custom_call.1} parent=1 // pred_check_branch
      %80 = sbr.rel (0) target = $region53
    $region52: #{tpu_custom_call.1} parent=1 // pred_region
      _
    $region53: #{tpu_custom_call.1} parent=1 // pred_fallthru
      _
    // Predicated region
    $region54: #{tpu_custom_call.1} parent=1 // pred_check
      _
    $region55: #{tpu_custom_call.1} parent=1 // pred_check_branch
      %82 = sbr.rel (0) target = $region57
    $region56: #{tpu_custom_call.1} parent=1 // pred_region
      _
    $region57: #{tpu_custom_call.1} parent=1 // pred_fallthru
      _
    // Predicated region
    $region58: #{tpu_custom_call.1} parent=1 // pred_check
      _
    $region59: #{tpu_custom_call.1} parent=1 // pred_check_branch
      %84 = sbr.rel (0) target = $region61
    $region60: #{tpu_custom_call.1} parent=1 // pred_region
      _
    $region61: #{tpu_custom_call.1} parent=1 // pred_fallthru
      _
    // Predicated region
    $region62: #{tpu_custom_call.1} parent=1 // pred_check
      _
    $region63: #{tpu_custom_call.1} parent=1 // pred_check_branch
      %86 = sbr.rel (0) target = $region65
    $region64: #{tpu_custom_call.1} parent=1 // pred_region
      _
    $region65: #{tpu_custom_call.1} parent=1 // pred_fallthru
      _
    // Predicated region
    $region66: #{tpu_custom_call.1} parent=1 // pred_check
      _
    $region67: #{tpu_custom_call.1} parent=1 // pred_check_branch
      %88 = sbr.rel (0) target = $region69
    $region68: #{tpu_custom_call.1} parent=1 // pred_region
      %90 = vsyncadd [#allocation9], 0
      %s91 = sshll.u32 %s16, 4
      %s92 = int_to_ptr.hbm [resolvable:$true] %s91
      %s93 = sshll.u32 [#allocation8], 4
      %s94 = int_to_ptr.vmem [resolvable:$true] %s93
      %99 = dma.hbm_to_vmem [thread:$0]  %s92, 3072, %s94, [#allocation9], 128, 128, 8
    $region69: #{tpu_custom_call.1} parent=1 // pred_fallthru
      _
    // Predicated region
    $region70: #{tpu_custom_call.1} parent=1 // pred_check
      _
    $region71: #{tpu_custom_call.1} parent=1 // pred_check_branch
      %101 = sbr.rel (0) target = $region73
    $region72: #{tpu_custom_call.1} parent=1 // pred_region
      %103 = dma.done [#allocation3], 128
    $region73: #{tpu_custom_call.1} parent=1 // pred_fallthru
      _
    // Predicated region
    $region74: #{tpu_custom_call.1} parent=1 // pred_check
      _
    $region75: #{tpu_custom_call.1} parent=1 // pred_check_branch
      %105 = sbr.rel (0) target = $region77
    $region76: #{tpu_custom_call.1} parent=1 // pred_region
      %107 = dma.done [#allocation6], 64
    $region77: #{tpu_custom_call.1} parent=1 // pred_fallthru
      _
    // Predicated region
    $region78: #{tpu_custom_call.1} parent=1 // pred_check
      _
    $region79: #{tpu_custom_call.1} parent=1 // pred_check_branch
      %109 = sbr.rel (0) target = $region81
    $region80: #{tpu_custom_call.1} parent=1 // pred_region
      %111 = dma.done [#allocation6], 64
    $region81: #{tpu_custom_call.1} parent=1 // pred_fallthru
      _
    // Predicated region
    $region82: #{tpu_custom_call.1} parent=1 // pred_check
      _
    $region83: #{tpu_custom_call.1} parent=1 // pred_check_branch
      %113 = sbr.rel (0) target = $region85
    $region84: #{tpu_custom_call.1} parent=1 // pred_region
      %115 = dma.done [#allocation9], 3072
    $region85: #{tpu_custom_call.1} parent=1 // pred_fallthru
      _
    %v117 = vld [vmem:[%s0] sm:$0xf]
    %v118 = vld [vmem:[%s0 + $0x4] sm:$0xf]
    %v119 = vld [vmem:[%s0 + $0x8] sm:$0xf]
    %v120 = vld [vmem:[%s0 + $0xc] sm:$0xf]
    %v121 = vunpack.c.l.bf16 %v117
    %v122 = vunpack.c.l.bf16 %v118
    %v123 = vunpack.c.l.bf16 %v119
    %v124 = vunpack.c.l.bf16 %v120
    %v125 = vld [vmem:[#allocation2] sm:$0xf]
    %v126 = vld [vmem:[#allocation2 + $0x4] sm:$0xf]
    %v129 = vunpack.c.l.b16 %v125
    %v130 = vunpack.c.l.b16 %v126
    %v131 = vpack.c.b16 %v130, %v129
    %v136 = vunpack.c.l.b16 %v117
    %v137 = vunpack.c.l.b16 %v118
    %v138 = vunpack.c.l.b16 %v119
    %v139 = vunpack.c.l.b16 %v120
    %v140 = vpack.c.b16 %v137, %v136
    %v141 = vpack.c.b16 %v139, %v138
    %vm144 = vcmask 261120
    %v146 = vsel %vm144, %v131, 0
    %148 = vmatpush.bf16.msra.mxu0 0
    %149 = vmatpush.bf16.msra.mxu0 0
    %150 = vmatpush.bf16.msra.mxu0 0
    %151 = vmatpush.bf16.msra.mxu0 0
    %152 = vmatpush.bf16.msra.mxu0 0
    %153 = vmatpush.bf16.msra.mxu0 0
    %154 = vmatpush.bf16.msra.mxu0 %v141
    %155 = vmatpush.bf16.msra.mxu0 %v140
    %156 = vmatmul.bf16.gmra.mxu0 %v146
    %v157 = vpop.f32.mrf.mxu0
    %v158 = vadd.f32 0.0, %v157
    %v159 = vpop.f32.mrf.mxu0
    %v160 = vadd.f32 0.0, %v159
    %161 = vdwg.mxu0
    %v162 = vpack.c.bf16 %v160, %v158
    %v163 = vld [vmem:[%s2] sm:$0xf]
    %v164 = vld [vmem:[%s2 + $0x4] sm:$0xf]
    %v165 = vld [vmem:[%s2 + $0x8] sm:$0xf]
    %v166 = vld [vmem:[%s2 + $0xc] sm:$0xf]
    %v167 = vld [vmem:[%s2 + $0x10] sm:$0xf]
    %v168 = vld [vmem:[%s2 + $0x14] sm:$0xf]
    %v169 = vld [vmem:[%s2 + $0x18] sm:$0xf]
    %v170 = vld [vmem:[%s2 + $0x1c] sm:$0xf]
    %v179 = vunpack.c.l.b16 %v163
    %v180 = vunpack.c.l.b16 %v164
    %v181 = vunpack.c.l.b16 %v165
    %v182 = vunpack.c.l.b16 %v166
    %v183 = vunpack.c.l.b16 %v167
    %v184 = vunpack.c.l.b16 %v168
    %v185 = vunpack.c.l.b16 %v169
    %v186 = vunpack.c.l.b16 %v170
    %v187 = vpack.c.b16 %v180, %v179
    %v188 = vpack.c.b16 %v182, %v181
    %v189 = vpack.c.b16 %v184, %v183
    %v190 = vpack.c.b16 %v186, %v185
    %vm195 = vcmask 523264
    %v197 = vsel %vm195, %v162, 0
    %199 = vmatpush.bf16.msra.mxu0 0
    %200 = vmatpush.bf16.msra.mxu0 0
    %201 = vmatpush.bf16.msra.mxu0 0
    %202 = vmatpush.bf16.msra.mxu0 0
    %203 = vmatpush.bf16.msra.mxu0 %v190
    %204 = vmatpush.bf16.msra.mxu0 %v189
    %205 = vmatpush.bf16.msra.mxu0 %v188
    %206 = vmatpush.bf16.msra.mxu0 %v187
    %207 = vmatmul.bf16.gmra.mxu0 %v197
    %v208 = vpop.f32.mrf.mxu0
    %v209 = vadd.f32 0.0, %v208
    %v210 = vpop.f32.mrf.mxu0
    %v211 = vadd.f32 0.0, %v210
    %212 = vdwg.mxu0
    %v213 = vpack.c.bf16 %v211, %v209
    %v214 = vld [vmem:[%s4] sm:$0xf]
    %v215 = vld [vmem:[%s4 + $0x4] sm:$0xf]
    %v216 = vld [vmem:[%s4 + $0x8] sm:$0xf]
    %v217 = vld [vmem:[%s4 + $0xc] sm:$0xf]
    %v222 = vunpack.c.l.b16 %v214
    %v223 = vunpack.c.l.b16 %v215
    %v224 = vunpack.c.l.b16 %v216
    %v225 = vunpack.c.l.b16 %v217
    %v226 = vpack.c.b16 %v223, %v222
    %v227 = vpack.c.b16 %v225, %v224
    %v231 = vsel %vm144, %v213, 0
    %233 = vmatpush.bf16.msra.mxu0 0
    %234 = vmatpush.bf16.msra.mxu0 0
    %235 = vmatpush.bf16.msra.mxu0 0
    %236 = vmatpush.bf16.msra.mxu0 0
    %237 = vmatpush.bf16.msra.mxu0 0
    %238 = vmatpush.bf16.msra.mxu0 0
    %239 = vmatpush.bf16.msra.mxu0 %v227
    %240 = vmatpush.bf16.msra.mxu0 %v226
    %241 = vmatmul.bf16.gmra.mxu0 %v231
    %v242 = vpop.f32.mrf.mxu0
    %v243 = vadd.f32 0.0, %v242
    %v244 = vpop.f32.mrf.mxu0
    %v245 = vadd.f32 0.0, %v244
    %246 = vdwg.mxu0
    %s247 = scalar_lea.vmem %s4, 16
    %v248 = vld [vmem:[%s247] sm:$0xf]
    %v249 = vld [vmem:[%s247 + $0x4] sm:$0xf]
    %v250 = vld [vmem:[%s247 + $0x8] sm:$0xf]
    %v251 = vld [vmem:[%s247 + $0xc] sm:$0xf]
    %v256 = vunpack.c.l.b16 %v248
    %v257 = vunpack.c.l.b16 %v249
    %v258 = vunpack.c.l.b16 %v250
    %v259 = vunpack.c.l.b16 %v251
    %v260 = vpack.c.b16 %v257, %v256
    %v261 = vpack.c.b16 %v259, %v258
    %264 = vmatpush.bf16.msra.mxu0 0
    %265 = vmatpush.bf16.msra.mxu0 0
    %266 = vmatpush.bf16.msra.mxu0 0
    %267 = vmatpush.bf16.msra.mxu0 0
    %268 = vmatpush.bf16.msra.mxu0 0
    %269 = vmatpush.bf16.msra.mxu0 0
    %270 = vmatpush.bf16.msra.mxu0 %v261
    %271 = vmatpush.bf16.msra.mxu0 %v260
    %272 = vmatmul.bf16.gmra.mxu0 %v231
    %v273 = vpop.f32.mrf.mxu0
    %v274 = vadd.f32 0.0, %v273
    %v275 = vpop.f32.mrf.mxu0
    %v276 = vadd.f32 0.0, %v275
    %277 = vdwg.mxu0
    %s278 = scalar_lea.vmem %s4, 32
    %v279 = vld [vmem:[%s278] sm:$0xf]
    %v280 = vld [vmem:[%s278 + $0x4] sm:$0xf]
    %v281 = vld [vmem:[%s278 + $0x8] sm:$0xf]
    %v282 = vld [vmem:[%s278 + $0xc] sm:$0xf]
    %v287 = vunpack.c.l.b16 %v279
    %v288 = vunpack.c.l.b16 %v280
    %v289 = vunpack.c.l.b16 %v281
    %v290 = vunpack.c.l.b16 %v282
    %v291 = vpack.c.b16 %v288, %v287
    %v292 = vpack.c.b16 %v290, %v289
    %295 = vmatpush.bf16.msra.mxu0 0
    %296 = vmatpush.bf16.msra.mxu0 0
    %297 = vmatpush.bf16.msra.mxu0 0
    %298 = vmatpush.bf16.msra.mxu0 0
    %299 = vmatpush.bf16.msra.mxu0 0
    %300 = vmatpush.bf16.msra.mxu0 0
    %301 = vmatpush.bf16.msra.mxu0 %v292
    %302 = vmatpush.bf16.msra.mxu0 %v291
    %303 = vmatmul.bf16.gmra.mxu0 %v231
    %v304 = vpop.f32.mrf.mxu0
    %v305 = vadd.f32 0.0, %v304
    %v306 = vpop.f32.mrf.mxu0
    %v307 = vadd.f32 0.0, %v306
    %308 = vdwg.mxu0
    %v309 = vpack.c.bf16 %v245, %v243
    %v310 = vpack.c.bf16 %v276, %v274
    %v311 = vpack.c.bf16 %v307, %v305
    %v312 = vld [vmem:[%s3] sm:$0xf]
    %v313 = vld [vmem:[%s3 + $0x4] sm:$0xf]
    %v314 = vld [vmem:[%s3 + $0x8] sm:$0xf]
    %v315 = vld [vmem:[%s3 + $0xc] sm:$0xf]
    %v320 = vunpack.c.l.b16 %v312
    %v321 = vunpack.c.l.b16 %v313
    %v322 = vunpack.c.l.b16 %v314
    %v323 = vunpack.c.l.b16 %v315
    %v324 = vpack.c.b16 %v321, %v320
    %v325 = vpack.c.b16 %v323, %v322
    %vm326 = vcmask 392192
    %v328 = vsel %vm326, %v324, 0
    %v331 = vsel %vm326, %v325, 0
    %333 = vmatpush.bf16.msra.mxu0 0
    %334 = vmatpush.bf16.msra.mxu0 0
    %335 = vmatpush.bf16.msra.mxu0 0
    %336 = vmatpush.bf16.msra.mxu0 0
    %337 = vmatpush.bf16.msra.mxu0 0
    %338 = vmatpush.bf16.msra.mxu0 %v311
    %339 = vmatpush.bf16.msra.mxu0 %v310
    %340 = vmatpush.bf16.msra.mxu0 %v309
    %341 = vmatmul.bf16.gmra.mxu0 %v328
    %v342 = vpop.f32.mrf.mxu0
    %v343 = vadd.f32 0.0, %v342
    %v344 = vpop.f32.mrf.mxu0
    %v345 = vadd.f32 0.0, %v344
    %346 = vmatmul.bf16.gmra.mxu0 %v331
    %v347 = vpop.f32.mrf.mxu0
    %v348 = vadd.f32 0.0, %v347
    %v349 = vpop.f32.mrf.mxu0
    %v350 = vadd.f32 0.0, %v349
    %351 = vdwg.mxu0
    %v352 = vadd.f32 %v121, %v343
    %v353 = vadd.f32 %v122, %v345
    %v354 = vadd.f32 %v123, %v348
    %v355 = vadd.f32 %v124, %v350
    %v356 = vld [vmem:[#allocation5] sm:$0xf]
    %v358 = vsel %vm144, %v356, 0
    %360 = vmatpush.bf16.msra.mxu0 0
    %361 = vmatpush.bf16.msra.mxu0 0
    %362 = vmatpush.bf16.msra.mxu0 0
    %363 = vmatpush.bf16.msra.mxu0 0
    %364 = vmatpush.bf16.msra.mxu0 0
    %365 = vmatpush.bf16.msra.mxu0 0
    %366 = vmatpush.bf16.msra.mxu0 %v141
    %367 = vmatpush.bf16.msra.mxu0 %v140
    %368 = vmatmul.bf16.gmra.mxu0 %v358
    %v369 = vpop.f32.mrf.mxu0
    %v370 = vadd.f32 0.0, %v369
    %v371 = vpop.f32.mrf.mxu0
    %372 = vdwg.mxu0
    %v373 = vpack.c.bf16 %v370, %v370
    %v374 = vld [vmem:[%s6] sm:$0xf]
    %v375 = vld [vmem:[%s6 + $0x4] sm:$0xf]
    %v376 = vld [vmem:[%s6 + $0x8] sm:$0xf]
    %v377 = vld [vmem:[%s6 + $0xc] sm:$0xf]
    %v378 = vld [vmem:[%s6 + $0x10] sm:$0xf]
    %v379 = vld [vmem:[%s6 + $0x14] sm:$0xf]
    %v380 = vld [vmem:[%s6 + $0x18] sm:$0xf]
    %v381 = vld [vmem:[%s6 + $0x1c] sm:$0xf]
    %v390 = vunpack.c.l.b16 %v374
    %v391 = vunpack.c.l.b16 %v375
    %v392 = vunpack.c.l.b16 %v376
    %v393 = vunpack.c.l.b16 %v377
    %v394 = vunpack.c.l.b16 %v378
    %v395 = vunpack.c.l.b16 %v379
    %v396 = vunpack.c.l.b16 %v380
    %v397 = vunpack.c.l.b16 %v381
    %v398 = vpack.c.b16 %v391, %v390
    %v399 = vpack.c.b16 %v393, %v392
    %v400 = vpack.c.b16 %v395, %v394
    %v401 = vpack.c.b16 %v397, %v396
    %v407 = vsel %vm195, %v373, 0
    %409 = vmatpush.bf16.msra.mxu0 0
    %410 = vmatpush.bf16.msra.mxu0 0
    %411 = vmatpush.bf16.msra.mxu0 0
    %412 = vmatpush.bf16.msra.mxu0 0
    %413 = vmatpush.bf16.msra.mxu0 %v401
    %414 = vmatpush.bf16.msra.mxu0 %v400
    %415 = vmatpush.bf16.msra.mxu0 %v399
    %416 = vmatpush.bf16.msra.mxu0 %v398
    %417 = vmatmul.bf16.gmra.mxu0 %v407
    %v418 = vpop.f32.mrf.mxu0
    %v419 = vadd.f32 0.0, %v418
    %v420 = vpop.f32.mrf.mxu0
    %421 = vdwg.mxu0
    %v422 = vpack.c.bf16 %v419, %v419
    %v423 = vld [vmem:[%s8] sm:$0xf]
    %v424 = vld [vmem:[%s8 + $0x4] sm:$0xf]
    %v427 = vunpack.c.l.b16 %v423
    %v428 = vunpack.c.l.b16 %v424
    %v429 = vpack.c.b16 %v428, %v427
    %vm431 = vcmask 130048
    %v433 = vsel %vm431, %v422, 0
    %435 = vmatpush.bf16.msra.mxu0 0
    %436 = vmatpush.bf16.msra.mxu0 0
    %437 = vmatpush.bf16.msra.mxu0 0
    %438 = vmatpush.bf16.msra.mxu0 0
    %439 = vmatpush.bf16.msra.mxu0 0
    %440 = vmatpush.bf16.msra.mxu0 0
    %441 = vmatpush.bf16.msra.mxu0 0
    %442 = vmatpush.bf16.msra.mxu0 %v429
    %443 = vmatmul.bf16.gmra.mxu0 %v433
    %v444 = vpop.f32.mrf.mxu0
    %v445 = vadd.f32 0.0, %v444
    %v446 = vpop.f32.mrf.mxu0
    %447 = vdwg.mxu0
    %s448 = scalar_lea.vmem %s8, 8
    %v449 = vld [vmem:[%s448] sm:$0xf]
    %v450 = vld [vmem:[%s448 + $0x4] sm:$0xf]
    %v453 = vunpack.c.l.b16 %v449
    %v454 = vunpack.c.l.b16 %v450
    %v455 = vpack.c.b16 %v454, %v453
    %457 = vmatpush.bf16.msra.mxu0 0
    %458 = vmatpush.bf16.msra.mxu0 0
    %459 = vmatpush.bf16.msra.mxu0 0
    %460 = vmatpush.bf16.msra.mxu0 0
    %461 = vmatpush.bf16.msra.mxu0 0
    %462 = vmatpush.bf16.msra.mxu0 0
    %463 = vmatpush.bf16.msra.mxu0 0
    %464 = vmatpush.bf16.msra.mxu0 %v455
    %465 = vmatmul.bf16.gmra.mxu0 %v433
    %v466 = vpop.f32.mrf.mxu0
    %v467 = vadd.f32 0.0, %v466
    %v468 = vpop.f32.mrf.mxu0
    %469 = vdwg.mxu0
    %s470 = scalar_lea.vmem %s8, 16
    %v471 = vld [vmem:[%s470] sm:$0xf]
    %v472 = vld [vmem:[%s470 + $0x4] sm:$0xf]
    %v475 = vunpack.c.l.b16 %v471
    %v476 = vunpack.c.l.b16 %v472
    %v477 = vpack.c.b16 %v476, %v475
    %479 = vmatpush.bf16.msra.mxu0 0
    %480 = vmatpush.bf16.msra.mxu0 0
    %481 = vmatpush.bf16.msra.mxu0 0
    %482 = vmatpush.bf16.msra.mxu0 0
    %483 = vmatpush.bf16.msra.mxu0 0
    %484 = vmatpush.bf16.msra.mxu0 0
    %485 = vmatpush.bf16.msra.mxu0 0
    %486 = vmatpush.bf16.msra.mxu0 %v477
    %487 = vmatmul.bf16.gmra.mxu0 %v433
    %v488 = vpop.f32.mrf.mxu0
    %v489 = vadd.f32 0.0, %v488
    %v490 = vpop.f32.mrf.mxu0
    %491 = vdwg.mxu0
    %v492 = vpack.c.bf16 %v467, %v445
    %v493 = vpack.c.bf16 %v489, %v489
    %v494 = vld [vmem:[%s7] sm:$0xf]
    %v495 = vld [vmem:[%s7 + $0x4] sm:$0xf]
    %v496 = vld [vmem:[%s7 + $0x8] sm:$0xf]
    %v497 = vld [vmem:[%s7 + $0xc] sm:$0xf]
    %v502 = vunpack.c.l.b16 %v494
    %v503 = vunpack.c.l.b16 %v495
    %v504 = vunpack.c.l.b16 %v496
    %v505 = vunpack.c.l.b16 %v497
    %v506 = vpack.c.b16 %v503, %v502
    %v507 = vpack.c.b16 %v505, %v504
    %vm508 = vcmask 195584
    %v510 = vsel %vm508, %v506, 0
    %v513 = vsel %vm508, %v507, 0
    %vm515 = vcmask 1043456
    %v517 = vsel %vm515, %v493, 0
    %519 = vmatpush.bf16.msra.mxu0 0
    %520 = vmatpush.bf16.msra.mxu0 0
    %521 = vmatpush.bf16.msra.mxu0 0
    %522 = vmatpush.bf16.msra.mxu0 0
    %523 = vmatpush.bf16.msra.mxu0 0
    %524 = vmatpush.bf16.msra.mxu0 0
    %525 = vmatpush.bf16.msra.mxu0 %v517
    %526 = vmatpush.bf16.msra.mxu0 %v492
    %527 = vmatmul.bf16.gmra.mxu0 %v510
    %v528 = vpop.f32.mrf.mxu0
    %v529 = vadd.f32 0.0, %v528
    %v530 = vpop.f32.mrf.mxu0
    %v531 = vadd.f32 0.0, %v530
    %532 = vmatmul.bf16.gmra.mxu0 %v513
    %v533 = vpop.f32.mrf.mxu0
    %v534 = vadd.f32 0.0, %v533
    %v535 = vpop.f32.mrf.mxu0
    %v536 = vadd.f32 0.0, %v535
    %537 = vdwg.mxu0
    %v538 = vadd.f32 %v352, %v529
    %v539 = vadd.f32 %v353, %v531
    %v540 = vadd.f32 %v354, %v534
    %v541 = vadd.f32 %v355, %v536
    %v542 = vld [vmem:[#allocation7] sm:$0xf]
    %v544 = vsel %vm144, %v542, 0
    %546 = vmatpush.bf16.msra.mxu0 0
    %547 = vmatpush.bf16.msra.mxu0 0
    %548 = vmatpush.bf16.msra.mxu0 0
    %549 = vmatpush.bf16.msra.mxu0 0
    %550 = vmatpush.bf16.msra.mxu0 0
    %551 = vmatpush.bf16.msra.mxu0 0
    %552 = vmatpush.bf16.msra.mxu0 %v141
    %553 = vmatpush.bf16.msra.mxu0 %v140
    %554 = vmatmul.bf16.gmra.mxu0 %v544
    %v555 = vpop.f32.mrf.mxu0
    %v556 = vadd.f32 0.0, %v555
    %v557 = vpop.f32.mrf.mxu0
    %558 = vdwg.mxu0
    %v559 = vpack.c.bf16 %v556, %v556
    %v560 = vld [vmem:[%s10] sm:$0xf]
    %v561 = vld [vmem:[%s10 + $0x4] sm:$0xf]
    %v562 = vld [vmem:[%s10 + $0x8] sm:$0xf]
    %v563 = vld [vmem:[%s10 + $0xc] sm:$0xf]
    %v564 = vld [vmem:[%s10 + $0x10] sm:$0xf]
    %v565 = vld [vmem:[%s10 + $0x14] sm:$0xf]
    %v566 = vld [vmem:[%s10 + $0x18] sm:$0xf]
    %v567 = vld [vmem:[%s10 + $0x1c] sm:$0xf]
    %v576 = vunpack.c.l.b16 %v560
    %v577 = vunpack.c.l.b16 %v561
    %v578 = vunpack.c.l.b16 %v562
    %v579 = vunpack.c.l.b16 %v563
    %v580 = vunpack.c.l.b16 %v564
    %v581 = vunpack.c.l.b16 %v565
    %v582 = vunpack.c.l.b16 %v566
    %v583 = vunpack.c.l.b16 %v567
    %v584 = vpack.c.b16 %v577, %v576
    %v585 = vpack.c.b16 %v579, %v578
    %v586 = vpack.c.b16 %v581, %v580
    %v587 = vpack.c.b16 %v583, %v582
    %v593 = vsel %vm195, %v559, 0
    %595 = vmatpush.bf16.msra.mxu0 0
    %596 = vmatpush.bf16.msra.mxu0 0
    %597 = vmatpush.bf16.msra.mxu0 0
    %598 = vmatpush.bf16.msra.mxu0 0
    %599 = vmatpush.bf16.msra.mxu0 %v587
    %600 = vmatpush.bf16.msra.mxu0 %v586
    %601 = vmatpush.bf16.msra.mxu0 %v585
    %602 = vmatpush.bf16.msra.mxu0 %v584
    %603 = vmatmul.bf16.gmra.mxu0 %v593
    %v604 = vpop.f32.mrf.mxu0
    %v605 = vadd.f32 0.0, %v604
    %v606 = vpop.f32.mrf.mxu0
    %607 = vdwg.mxu0
    %v608 = vpack.c.bf16 %v605, %v605
    %v609 = vld [vmem:[%s12] sm:$0xf]
    %vm610 = vcmask 64512
    %v612 = vsel %vm610, %v608, 0
    %v615 = vsel %vm515, %v609, 0
    %617 = vmatpush.bf16.msra.mxu0 0
    %618 = vmatpush.bf16.msra.mxu0 0
    %619 = vmatpush.bf16.msra.mxu0 0
    %620 = vmatpush.bf16.msra.mxu0 0
    %621 = vmatpush.bf16.msra.mxu0 0
    %622 = vmatpush.bf16.msra.mxu0 0
    %623 = vmatpush.bf16.msra.mxu0 0
    %624 = vmatpush.bf16.msra.mxu0 %v615
    %625 = vmatmul.bf16.gmra.mxu0 %v612
    %v626 = vpop.f32.mrf.mxu0
    %v627 = vadd.f32 0.0, %v626
    %v628 = vpop.f32.mrf.mxu0
    %629 = vdwg.mxu0
    %s630 = scalar_lea.vmem %s12, 4
    %v631 = vld [vmem:[%s630] sm:$0xf]
    %v633 = vsel %vm515, %v631, 0
    %635 = vmatpush.bf16.msra.mxu0 0
    %636 = vmatpush.bf16.msra.mxu0 0
    %637 = vmatpush.bf16.msra.mxu0 0
    %638 = vmatpush.bf16.msra.mxu0 0
    %639 = vmatpush.bf16.msra.mxu0 0
    %640 = vmatpush.bf16.msra.mxu0 0
    %641 = vmatpush.bf16.msra.mxu0 0
    %642 = vmatpush.bf16.msra.mxu0 %v633
    %643 = vmatmul.bf16.gmra.mxu0 %v612
    %v644 = vpop.f32.mrf.mxu0
    %v645 = vadd.f32 0.0, %v644
    %v646 = vpop.f32.mrf.mxu0
    %647 = vdwg.mxu0
    %s648 = scalar_lea.vmem %s12, 8
    %v649 = vld [vmem:[%s648] sm:$0xf]
    %v651 = vsel %vm515, %v649, 0
    %653 = vmatpush.bf16.msra.mxu0 0
    %654 = vmatpush.bf16.msra.mxu0 0
    %655 = vmatpush.bf16.msra.mxu0 0
    %656 = vmatpush.bf16.msra.mxu0 0
    %657 = vmatpush.bf16.msra.mxu0 0
    %658 = vmatpush.bf16.msra.mxu0 0
    %659 = vmatpush.bf16.msra.mxu0 0
    %660 = vmatpush.bf16.msra.mxu0 %v651
    %661 = vmatmul.bf16.gmra.mxu0 %v612
    %v662 = vpop.f32.mrf.mxu0
    %v663 = vadd.f32 0.0, %v662
    %v664 = vpop.f32.mrf.mxu0
    %665 = vdwg.mxu0
    %v666 = vpack.c.bf16 %v645, %v627
    %v667 = vpack.c.bf16 %v663, %v663
    %v668 = vld [vmem:[%s11] sm:$0xf]
    %v669 = vld [vmem:[%s11 + $0x4] sm:$0xf]
    %v670 = vld [vmem:[%s11 + $0x8] sm:$0xf]
    %v671 = vld [vmem:[%s11 + $0xc] sm:$0xf]
    %v676 = vunpack.c.l.b16 %v668
    %v677 = vunpack.c.l.b16 %v669
    %v678 = vunpack.c.l.b16 %v670
    %v679 = vunpack.c.l.b16 %v671
    %v680 = vpack.c.b16 %v677, %v676
    %v681 = vpack.c.b16 %v679, %v678
    %v683 = vsel %vm508, %v680, 0
    %v686 = vsel %vm508, %v681, 0
    %v689 = vsel %vm515, %v667, 0
    %691 = vmatpush.bf16.msra.mxu0 0
    %692 = vmatpush.bf16.msra.mxu0 0
    %693 = vmatpush.bf16.msra.mxu0 0
    %694 = vmatpush.bf16.msra.mxu0 0
    %695 = vmatpush.bf16.msra.mxu0 0
    %696 = vmatpush.bf16.msra.mxu0 0
    %697 = vmatpush.bf16.msra.mxu0 %v689
    %698 = vmatpush.bf16.msra.mxu0 %v666
    %699 = vmatmul.bf16.gmra.mxu0 %v683
    %v700 = vpop.f32.mrf.mxu0
    %v701 = vadd.f32 0.0, %v700
    %v702 = vpop.f32.mrf.mxu0
    %v703 = vadd.f32 0.0, %v702
    %704 = vmatmul.bf16.gmra.mxu0 %v686
    %v705 = vpop.f32.mrf.mxu0
    %v706 = vadd.f32 0.0, %v705
    %v707 = vpop.f32.mrf.mxu0
    %v708 = vadd.f32 0.0, %v707
    %709 = vdwg.mxu0
    %v710 = vadd.f32 %v538, %v701
    %v711 = vadd.f32 %v539, %v703
    %v712 = vadd.f32 %v540, %v706
    %v713 = vadd.f32 %v541, %v708
    %v714 = vld [vmem:[%s13] sm:$0x1]
    %v716 = vperm.slane %v714, 0
    %v718 = vmul.f32 %v710, %v716
    %v719 = vmul.f32 %v711, %v716
    %v720 = vmul.f32 %v712, %v716
    %v721 = vmul.f32 %v713, %v716
    %v722 = vld [vmem:[%s14] sm:$0x1]
    %v724 = vperm.slane %v722, 0
    %v726 = vadd.f32 %v718, %v724
    %v727 = vadd.f32 %v719, %v724
    %v728 = vadd.f32 %v720, %v724
    %v729 = vadd.f32 %v721, %v724
    %v730 = vmax.f32 %v726, 0.0
    %v731 = vmax.f32 %v727, 0.0
    %v732 = vmax.f32 %v728, 0.0
    %v733 = vmax.f32 %v729, 0.0
    %v734 = vpack.c.bf16 %v731, %v730
    %v735 = vpack.c.bf16 %v733, %v732
    %v736 = vld [vmem:[#allocation8] sm:$0xff]
    %v737 = vld [vmem:[#allocation8 + $0x8] sm:$0xff]
    %v738 = vld [vmem:[#allocation8 + $0x10] sm:$0xff]
    %v739 = vld [vmem:[#allocation8 + $0x18] sm:$0xff]
    %v740 = vld [vmem:[#allocation8 + $0x20] sm:$0xff]
    %v741 = vld [vmem:[#allocation8 + $0x28] sm:$0xff]
    %v742 = vld [vmem:[#allocation8 + $0x30] sm:$0xff]
    %v743 = vld [vmem:[#allocation8 + $0x38] sm:$0xff]
    %v752 = vunpack.c.l.b16 %v736
    %v753 = vunpack.c.h.b16 %v736
    %v754 = vunpack.c.l.b16 %v737
    %v755 = vunpack.c.h.b16 %v737
    %v756 = vunpack.c.l.b16 %v738
    %v757 = vunpack.c.h.b16 %v738
    %v758 = vunpack.c.l.b16 %v739
    %v759 = vunpack.c.h.b16 %v739
    %v760 = vunpack.c.l.b16 %v740
    %v761 = vunpack.c.h.b16 %v740
    %v762 = vunpack.c.l.b16 %v741
    %v763 = vunpack.c.h.b16 %v741
    %v764 = vunpack.c.l.b16 %v742
    %v765 = vunpack.c.h.b16 %v742
    %v766 = vunpack.c.l.b16 %v743
    %v767 = vunpack.c.h.b16 %v743
    %v768 = vpack.c.b16 %v754, %v752
    %v769 = vpack.c.b16 %v755, %v753
    %v770 = vpack.c.b16 %v758, %v756
    %v771 = vpack.c.b16 %v759, %v757
    %v772 = vpack.c.b16 %v762, %v760
    %v773 = vpack.c.b16 %v763, %v761
    %v774 = vpack.c.b16 %v766, %v764
    %v775 = vpack.c.b16 %v767, %v765
    %v785 = vsel %vm195, %v734, 0
    %v788 = vsel %vm195, %v735, 0
    %790 = vmatpush.bf16.msra.mxu0 0
    %791 = vmatpush.bf16.msra.mxu0 0
    %792 = vmatpush.bf16.msra.mxu0 0
    %793 = vmatpush.bf16.msra.mxu0 0
    %794 = vmatpush.bf16.msra.mxu0 %v774
    %795 = vmatpush.bf16.msra.mxu0 %v772
    %796 = vmatpush.bf16.msra.mxu0 %v770
    %797 = vmatpush.bf16.msra.mxu0 %v768
    %798 = vmatmul.bf16.gmra.mxu0 %v785
    %v799 = vpop.f32.mrf.mxu0
    %v800 = vadd.f32 0.0, %v799
    %v801 = vpop.f32.mrf.mxu0
    %v802 = vadd.f32 0.0, %v801
    %803 = vmatmul.bf16.gmra.mxu0 %v788
    %v804 = vpop.f32.mrf.mxu0
    %v805 = vadd.f32 0.0, %v804
    %v806 = vpop.f32.mrf.mxu0
    %v807 = vadd.f32 0.0, %v806
    %808 = vdwg.mxu0
    %809 = vmatpush.bf16.msra.mxu0 0
    %810 = vmatpush.bf16.msra.mxu0 0
    %811 = vmatpush.bf16.msra.mxu0 0
    %812 = vmatpush.bf16.msra.mxu0 0
    %813 = vmatpush.bf16.msra.mxu0 %v775
    %814 = vmatpush.bf16.msra.mxu0 %v773
    %815 = vmatpush.bf16.msra.mxu0 %v771
    %816 = vmatpush.bf16.msra.mxu0 %v769
    %817 = vmatmul.bf16.gmra.mxu0 %v785
    %v818 = vpop.f32.mrf.mxu0
    %v819 = vadd.f32 0.0, %v818
    %v820 = vpop.f32.mrf.mxu0
    %v821 = vadd.f32 0.0, %v820
    %822 = vmatmul.bf16.gmra.mxu0 %v788
    %v823 = vpop.f32.mrf.mxu0
    %v824 = vadd.f32 0.0, %v823
    %v825 = vpop.f32.mrf.mxu0
    %v826 = vadd.f32 0.0, %v825
    %827 = vdwg.mxu0
    %s828 = scalar_lea.vmem [#allocation8], 64
    %v829 = vld [vmem:[%s828] sm:$0xff]
    %v830 = vld [vmem:[%s828 + $0x8] sm:$0xff]
    %v831 = vld [vmem:[%s828 + $0x10] sm:$0xff]
    %v832 = vld [vmem:[%s828 + $0x18] sm:$0xff]
    %v833 = vld [vmem:[%s828 + $0x20] sm:$0xff]
    %v834 = vld [vmem:[%s828 + $0x28] sm:$0xff]
    %v835 = vld [vmem:[%s828 + $0x30] sm:$0xff]
    %v836 = vld [vmem:[%s828 + $0x38] sm:$0xff]
    %v845 = vunpack.c.l.b16 %v829
    %v846 = vunpack.c.h.b16 %v829
    %v847 = vunpack.c.l.b16 %v830
    %v848 = vunpack.c.h.b16 %v830
    %v849 = vunpack.c.l.b16 %v831
    %v850 = vunpack.c.h.b16 %v831
    %v851 = vunpack.c.l.b16 %v832
    %v852 = vunpack.c.h.b16 %v832
    %v853 = vunpack.c.l.b16 %v833
    %v854 = vunpack.c.h.b16 %v833
    %v855 = vunpack.c.l.b16 %v834
    %v856 = vunpack.c.h.b16 %v834
    %v857 = vunpack.c.l.b16 %v835
    %v858 = vunpack.c.h.b16 %v835
    %v859 = vunpack.c.l.b16 %v836
    %v860 = vunpack.c.h.b16 %v836
    %v861 = vpack.c.b16 %v847, %v845
    %v862 = vpack.c.b16 %v848, %v846
    %v863 = vpack.c.b16 %v851, %v849
    %v864 = vpack.c.b16 %v852, %v850
    %v865 = vpack.c.b16 %v855, %v853
    %v866 = vpack.c.b16 %v856, %v854
    %v867 = vpack.c.b16 %v859, %v857
    %v868 = vpack.c.b16 %v860, %v858
    %877 = vmatpush.bf16.msra.mxu0 0
    %878 = vmatpush.bf16.msra.mxu0 0
    %879 = vmatpush.bf16.msra.mxu0 0
    %880 = vmatpush.bf16.msra.mxu0 0
    %881 = vmatpush.bf16.msra.mxu0 %v867
    %882 = vmatpush.bf16.msra.mxu0 %v865
    %883 = vmatpush.bf16.msra.mxu0 %v863
    %884 = vmatpush.bf16.msra.mxu0 %v861
    %885 = vmatmul.bf16.gmra.mxu0 %v785
    %v886 = vpop.f32.mrf.mxu0
    %v887 = vadd.f32 0.0, %v886
    %v888 = vpop.f32.mrf.mxu0
    %v889 = vadd.f32 0.0, %v888
    %890 = vmatmul.bf16.gmra.mxu0 %v788
    %v891 = vpop.f32.mrf.mxu0
    %v892 = vadd.f32 0.0, %v891
    %v893 = vpop.f32.mrf.mxu0
    %v894 = vadd.f32 0.0, %v893
    %895 = vdwg.mxu0
    %896 = vmatpush.bf16.msra.mxu0 0
    %897 = vmatpush.bf16.msra.mxu0 0
    %898 = vmatpush.bf16.msra.mxu0 0
    %899 = vmatpush.bf16.msra.mxu0 0
    %900 = vmatpush.bf16.msra.mxu0 %v868
    %901 = vmatpush.bf16.msra.mxu0 %v866
    %902 = vmatpush.bf16.msra.mxu0 %v864
    %903 = vmatpush.bf16.msra.mxu0 %v862
    %904 = vmatmul.bf16.gmra.mxu0 %v785
    %v905 = vpop.f32.mrf.mxu0
    %v906 = vadd.f32 0.0, %v905
    %v907 = vpop.f32.mrf.mxu0
    %v908 = vadd.f32 0.0, %v907
    %909 = vmatmul.bf16.gmra.mxu0 %v788
    %v910 = vpop.f32.mrf.mxu0
    %v911 = vadd.f32 0.0, %v910
    %v912 = vpop.f32.mrf.mxu0
    %v913 = vadd.f32 0.0, %v912
    %914 = vdwg.mxu0
    %s915 = scalar_lea.vmem [#allocation8], 128
    %v916 = vld [vmem:[%s915] sm:$0xff]
    %v917 = vld [vmem:[%s915 + $0x8] sm:$0xff]
    %v918 = vld [vmem:[%s915 + $0x10] sm:$0xff]
    %v919 = vld [vmem:[%s915 + $0x18] sm:$0xff]
    %v920 = vld [vmem:[%s915 + $0x20] sm:$0xff]
    %v921 = vld [vmem:[%s915 + $0x28] sm:$0xff]
    %v922 = vld [vmem:[%s915 + $0x30] sm:$0xff]
    %v923 = vld [vmem:[%s915 + $0x38] sm:$0xff]
    %v932 = vunpack.c.l.b16 %v916
    %v933 = vunpack.c.h.b16 %v916
    %v934 = vunpack.c.l.b16 %v917
    %v935 = vunpack.c.h.b16 %v917
    %v936 = vunpack.c.l.b16 %v918
    %v937 = vunpack.c.h.b16 %v918
    %v938 = vunpack.c.l.b16 %v919
    %v939 = vunpack.c.h.b16 %v919
    %v940 = vunpack.c.l.b16 %v920
    %v941 = vunpack.c.h.b16 %v920
    %v942 = vunpack.c.l.b16 %v921
    %v943 = vunpack.c.h.b16 %v921
    %v944 = vunpack.c.l.b16 %v922
    %v945 = vunpack.c.h.b16 %v922
    %v946 = vunpack.c.l.b16 %v923
    %v947 = vunpack.c.h.b16 %v923
    %v948 = vpack.c.b16 %v934, %v932
    %v949 = vpack.c.b16 %v935, %v933
    %v950 = vpack.c.b16 %v938, %v936
    %v951 = vpack.c.b16 %v939, %v937
    %v952 = vpack.c.b16 %v942, %v940
    %v953 = vpack.c.b16 %v943, %v941
    %v954 = vpack.c.b16 %v946, %v944
    %v955 = vpack.c.b16 %v947, %v945
    %964 = vmatpush.bf16.msra.mxu0 0
    %965 = vmatpush.bf16.msra.mxu0 0
    %966 = vmatpush.bf16.msra.mxu0 0
    %967 = vmatpush.bf16.msra.mxu0 0
    %968 = vmatpush.bf16.msra.mxu0 %v954
    %969 = vmatpush.bf16.msra.mxu0 %v952
    %970 = vmatpush.bf16.msra.mxu0 %v950
    %971 = vmatpush.bf16.msra.mxu0 %v948
    %972 = vmatmul.bf16.gmra.mxu0 %v785
    %v973 = vpop.f32.mrf.mxu0
    %v974 = vadd.f32 0.0, %v973
    %v975 = vpop.f32.mrf.mxu0
    %v976 = vadd.f32 0.0, %v975
    %977 = vmatmul.bf16.gmra.mxu0 %v788
    %v978 = vpop.f32.mrf.mxu0
    %v979 = vadd.f32 0.0, %v978
    %v980 = vpop.f32.mrf.mxu0
    %v981 = vadd.f32 0.0, %v980
    %982 = vdwg.mxu0
    %983 = vmatpush.bf16.msra.mxu0 0
    %984 = vmatpush.bf16.msra.mxu0 0
    %985 = vmatpush.bf16.msra.mxu0 0
    %986 = vmatpush.bf16.msra.mxu0 0
    %987 = vmatpush.bf16.msra.mxu0 %v955
    %988 = vmatpush.bf16.msra.mxu0 %v953
    %989 = vmatpush.bf16.msra.mxu0 %v951
    %990 = vmatpush.bf16.msra.mxu0 %v949
    %991 = vmatmul.bf16.gmra.mxu0 %v785
    %v992 = vpop.f32.mrf.mxu0
    %v993 = vadd.f32 0.0, %v992
    %v994 = vpop.f32.mrf.mxu0
    %v995 = vadd.f32 0.0, %v994
    %996 = vmatmul.bf16.gmra.mxu0 %v788
    %v997 = vpop.f32.mrf.mxu0
    %v998 = vadd.f32 0.0, %v997
    %v999 = vpop.f32.mrf.mxu0
    %v1000 = vadd.f32 0.0, %v999
    %1001 = vdwg.mxu0
    %v1002 = vpack.c.bf16 %v802, %v800
    %v1003 = vpack.c.bf16 %v821, %v819
    %v1004 = vpack.c.bf16 %v807, %v805
    %v1005 = vpack.c.bf16 %v826, %v824
    %v1006 = vpack.c.bf16 %v889, %v887
    %v1007 = vpack.c.bf16 %v908, %v906
    %v1008 = vpack.c.bf16 %v894, %v892
    %v1009 = vpack.c.bf16 %v913, %v911
    %v1010 = vpack.c.bf16 %v976, %v974
    %v1011 = vpack.c.bf16 %v995, %v993
    %v1012 = vpack.c.bf16 %v981, %v979
    %v1013 = vpack.c.bf16 %v1000, %v998
    %v1014 = vld [vmem:[%s15] sm:$0xf]
    %v1015 = vld [vmem:[%s15 + $0x4] sm:$0xf]
    %v1016 = vld [vmem:[%s15 + $0x8] sm:$0xf]
    %v1017 = vld [vmem:[%s15 + $0xc] sm:$0xf]
    %v1018 = vld [vmem:[%s15 + $0x10] sm:$0xf]
    %v1019 = vld [vmem:[%s15 + $0x14] sm:$0xf]
    %v1020 = vld [vmem:[%s15 + $0x18] sm:$0xf]
    %v1021 = vld [vmem:[%s15 + $0x1c] sm:$0xf]
    %v1030 = vunpack.c.l.b16 %v1014
    %v1031 = vunpack.c.l.b16 %v1015
    %v1032 = vunpack.c.l.b16 %v1016
    %v1033 = vunpack.c.l.b16 %v1017
    %v1034 = vunpack.c.l.b16 %v1018
    %v1035 = vunpack.c.l.b16 %v1019
    %v1036 = vunpack.c.l.b16 %v1020
    %v1037 = vunpack.c.l.b16 %v1021
    %v1038 = vpack.c.b16 %v1031, %v1030
    %v1039 = vpack.c.b16 %v1033, %v1032
    %v1040 = vpack.c.b16 %v1035, %v1034
    %v1041 = vpack.c.b16 %v1037, %v1036
    %vm1042 = vcmask 785408
    %v1044 = vsel %vm1042, %v1038, 0
    %v1047 = vsel %vm1042, %v1039, 0
    %v1050 = vsel %vm1042, %v1040, 0
    %v1053 = vsel %vm1042, %v1041, 0
    %1055 = vmatpush.bf16.msra.mxu0 0
    %1056 = vmatpush.bf16.msra.mxu0 0
    %1057 = vmatpush.bf16.msra.mxu0 %v1012
    %1058 = vmatpush.bf16.msra.mxu0 %v1010
    %1059 = vmatpush.bf16.msra.mxu0 %v1008
    %1060 = vmatpush.bf16.msra.mxu0 %v1006
    %1061 = vmatpush.bf16.msra.mxu0 %v1004
    %1062 = vmatpush.bf16.msra.mxu0 %v1002
    %1063 = vmatmul.bf16.gmra.mxu0 %v1044
    %v1064 = vpop.f32.mrf.mxu0
    %v1065 = vadd.f32 0.0, %v1064
    %v1066 = vpop.f32.mrf.mxu0
    %v1067 = vadd.f32 0.0, %v1066
    %1068 = vmatmul.bf16.gmra.mxu0 %v1047
    %v1069 = vpop.f32.mrf.mxu0
    %v1070 = vadd.f32 0.0, %v1069
    %v1071 = vpop.f32.mrf.mxu0
    %v1072 = vadd.f32 0.0, %v1071
    %1073 = vmatmul.bf16.gmra.mxu0 %v1050
    %v1074 = vpop.f32.mrf.mxu0
    %v1075 = vadd.f32 0.0, %v1074
    %v1076 = vpop.f32.mrf.mxu0
    %v1077 = vadd.f32 0.0, %v1076
    %1078 = vmatmul.bf16.gmra.mxu0 %v1053
    %v1079 = vpop.f32.mrf.mxu0
    %v1080 = vadd.f32 0.0, %v1079
    %v1081 = vpop.f32.mrf.mxu0
    %v1082 = vadd.f32 0.0, %v1081
    %1083 = vdwg.mxu0
    %1084 = vmatpush.bf16.msra.mxu0 0
    %1085 = vmatpush.bf16.msra.mxu0 0
    %1086 = vmatpush.bf16.msra.mxu0 %v1013
    %1087 = vmatpush.bf16.msra.mxu0 %v1011
    %1088 = vmatpush.bf16.msra.mxu0 %v1009
    %1089 = vmatpush.bf16.msra.mxu0 %v1007
    %1090 = vmatpush.bf16.msra.mxu0 %v1005
    %1091 = vmatpush.bf16.msra.mxu0 %v1003
    %1092 = vmatmul.bf16.gmra.mxu0 %v1044
    %v1093 = vpop.f32.mrf.mxu0
    %v1094 = vadd.f32 0.0, %v1093
    %v1095 = vpop.f32.mrf.mxu0
    %v1096 = vadd.f32 0.0, %v1095
    %1097 = vmatmul.bf16.gmra.mxu0 %v1047
    %v1098 = vpop.f32.mrf.mxu0
    %v1099 = vadd.f32 0.0, %v1098
    %v1100 = vpop.f32.mrf.mxu0
    %v1101 = vadd.f32 0.0, %v1100
    %1102 = vmatmul.bf16.gmra.mxu0 %v1050
    %v1103 = vpop.f32.mrf.mxu0
    %v1104 = vadd.f32 0.0, %v1103
    %v1105 = vpop.f32.mrf.mxu0
    %v1106 = vadd.f32 0.0, %v1105
    %1107 = vmatmul.bf16.gmra.mxu0 %v1053
    %v1108 = vpop.f32.mrf.mxu0
    %v1109 = vadd.f32 0.0, %v1108
    %v1110 = vpop.f32.mrf.mxu0
    %v1111 = vadd.f32 0.0, %v1110
    %1112 = vdwg.mxu0
    %1113 = vst [vmem:[#allocation10] sm:$0xff] %v1065
    %1114 = vst [vmem:[#allocation10 + $0x8] sm:$0xff] %v1094
    %1115 = vst [vmem:[#allocation10 + $0x10] sm:$0xff] %v1067
    %1116 = vst [vmem:[#allocation10 + $0x18] sm:$0xff] %v1096
    %1117 = vst [vmem:[#allocation10 + $0x20] sm:$0xff] %v1070
    %1118 = vst [vmem:[#allocation10 + $0x28] sm:$0xff] %v1099
    %1119 = vst [vmem:[#allocation10 + $0x30] sm:$0xff] %v1072
    %1120 = vst [vmem:[#allocation10 + $0x38] sm:$0xff] %v1101
    %1121 = vst [vmem:[#allocation10 + $0x40] sm:$0xff] %v1075
    %1122 = vst [vmem:[#allocation10 + $0x48] sm:$0xff] %v1104
    %1123 = vst [vmem:[#allocation10 + $0x50] sm:$0xff] %v1077
    %1124 = vst [vmem:[#allocation10 + $0x58] sm:$0xff] %v1106
    %1125 = vst [vmem:[#allocation10 + $0x60] sm:$0xff] %v1080
    %1126 = vst [vmem:[#allocation10 + $0x68] sm:$0xff] %v1109
    %1127 = vst [vmem:[#allocation10 + $0x70] sm:$0xff] %v1082
    %1128 = vst [vmem:[#allocation10 + $0x78] sm:$0xff] %v1111
    // Predicated region
    $region86: #{tpu_custom_call.1} parent=1 // pred_check
      _
    $region87: #{tpu_custom_call.1} parent=1 // pred_check_branch
      %1130 = sbr.rel (0) target = $region89
    $region88: #{tpu_custom_call.1} parent=1 // pred_region
      %1132 = vsyncadd [#allocation4], 0
      %s1133 = sshll.u32 [#allocation10], 4
      %s1134 = int_to_ptr.vmem [resolvable:$true] %s1133
      %s1135 = sshll.u32 %s17, 4
      %s1136 = int_to_ptr.hbm [resolvable:$true] %s1135
      %1141 = dma.vmem_to_hbm [thread:$0]  %s1134, 2048, %s1136, [#allocation4], 256, 256, 16
    $region89: #{tpu_custom_call.1} parent=1 // pred_fallthru
      _
    // Predicated region
    $region90: #{tpu_custom_call.1} parent=1 // pred_check
      _
    $region91: #{tpu_custom_call.1} parent=1 // pred_check_branch
      %1143 = sbr.rel (0) target = $region93
    $region92: #{tpu_custom_call.1} parent=1 // pred_region
      %1145 = dma.done [#allocation4], 2048
    $region93: #{tpu_custom_call.1} parent=1 // pred_fallthru
      _
    %1146 = vsyncpa [#allocation3], 1
    %1147 = vsyncpa [#allocation6], 1
    %1148 = vsyncpa [#allocation9], 1
    %1149 = vsyncpa [#allocation4], 1

</llo_original>
